<compile_context>
chip_gen: v7x
topology: tpu7x:2x2x1
jax: 0.10.0
libtpu: 0.0.40
codegen_flags: <defaults>
</compile_context>

<pallas_src>
import jax
import jax.numpy as jnp
from jax import lax
from jax.experimental import pallas as pl
from jax.experimental.pallas import tpu as pltpu

# Module hyperparameters (from the PyTorch script)
D_MODEL = 64
MAX_LEN = 52
N_SEGMENTS = 2
VOCAB_SIZE = 4          # len({'[PAD]','[CLS]','[SEP]','[MASK]'})
LN_EPS = 1e-5

# Bit-packing constants: per-token code = word_id + VOCAB_SIZE * seg_id (in [0,8)),
# per-pair code = lo_token_code + 8 * hi_token_code (in [0,64)).
assert VOCAB_SIZE & (VOCAB_SIZE - 1) == 0 and N_SEGMENTS & (N_SEGMENTS - 1) == 0
_PAIR_BASE = VOCAB_SIZE * N_SEGMENTS            # 8
_PAIR_SHIFT = _PAIR_BASE.bit_length() - 1       # 3
_LANES = 2 * D_MODEL                            # 128 (two tokens per output row)

# Streaming VMEM budget for the double-buffered (tm2,128)-sized slabs
# (2x output + 2x lane-padded codes + 2x positional slab).
_STREAM_BUDGET_BYTES = 40 * 1024 * 1024


def _embedding_ln_kernel(codes_ref, pos_ref, ctab_ref, ln_ref, m_ref, out_ref):
    """One tile of packed (2 tokens / 128-lane row) embedding sum + LayerNorm.

    codes_ref : (tm2, 1)   int32  packed pair codes: code(2r) + 8*code(2r+1),
                                  code = word_id + 4*seg_id in [0, 8)
    pos_ref   : (tm2, 128) f32    resident positional slab (pair-packed)
    ctab_ref  : (8, 128)   f32    combined word+segment table, lane-tiled x2
    ln_ref    : (2, 128)   f32    row0 = gamma (tiled x2), row1 = beta (tiled x2)
    m_ref     : (128, 128) f32    block-diag averaging matrix (two 64x64 blocks of 1/64)
    out_ref   : (tm2, 128) f32    lane-dense output (token 2r | token 2r+1)
    """
    # (1,128) half-lane mask; broadcasts along sublanes in the selects below.
    lo_half = lax.broadcasted_iota(jnp.int32, (1, _LANES), 1) < D_MODEL

    codes = codes_ref[...]                            # (tm2, 1) int32
    lo_code = codes & (_PAIR_BASE - 1)                # token 2r   code
    hi_code = codes >> _PAIR_SHIFT                    # token 2r+1 code
    code = jnp.where(lo_half, lo_code, hi_code)       # (tm2, 128), values in [0, 8)

    # Combined word+segment gather: 3-bit binary select tree over the 8-row table.
    b0 = (code & 1) != 0
    b1 = (code & 2) != 0
    b2 = (code & 4) != 0
    t01 = jnp.where(b0, ctab_ref[1:2, :], ctab_ref[0:1, :])
    t23 = jnp.where(b0, ctab_ref[3:4, :], ctab_ref[2:3, :])
    t45 = jnp.where(b0, ctab_ref[5:6, :], ctab_ref[4:5, :])
    t67 = jnp.where(b0, ctab_ref[7:8, :], ctab_ref[6:7, :])
    t_lo = jnp.where(b1, t23, t01)
    t_hi = jnp.where(b1, t67, t45)
    emb = jnp.where(b2, t_hi, t_lo) + pos_ref[...]    # (tm2, 128)

    # Per-token LayerNorm.  Each 128-lane row holds two independent tokens; the
    # block-diagonal matmul averages each 64-lane half and broadcasts the result
    # across that half.  MXU is otherwise idle, so these matmuls are free filler;
    # HIGHEST precision keeps f32-level accuracy for the 1e-4 tolerance.
    mean = jnp.dot(emb, m_ref[...], preferred_element_type=jnp.float32,
                   precision=lax.Precision.HIGHEST)
    cen = emb - mean
    var = jnp.dot(cen * cen, m_ref[...], preferred_element_type=jnp.float32,
                  precision=lax.Precision.HIGHEST)
    xhat = cen * lax.rsqrt(var + LN_EPS)
    # Dropout = identity (eval semantics).
    out_ref[...] = (xhat * ln_ref[0:1, :] + ln_ref[1:2, :]).astype(out_ref.dtype)


def _choose_seqs_per_tile(B, S, target_tokens=16384):
    """Sequences per grid step.  The tile must cover whole sequences (so the
    resident positional slab repeats exactly), be pair-packable, keep the packed
    sublane count a multiple of 8, and fit the conservative streaming VMEM budget
    (6 double-buffered (tm2,128)x4B slabs).  Prefers a grid length >= 4 (then >= 2)
    so the v7x megacore keeps both TensorCores busy."""
    def ok(q):
        tm = S * q
        return (B % q == 0 and tm % 2 == 0 and (tm // 2) % 8 == 0
                and 6 * (tm // 2) * 512 <= _STREAM_BUDGET_BYTES)

    good = [q for q in range(1, B + 1) if ok(q)]
    if not good:
        if (B * S) % 2 != 0:
            raise ValueError("B*S must be even to pack two tokens per output row")
        return B                          # whole array as one (full-block) tile
    fitting = [q for q in good if S * q <= target_tokens] or [min(good)]
    for min_grid in (4, 2):
        multi = [q for q in fitting if B // q >= min_grid]
        if multi:
            return max(multi)
    return max(fitting)


def bert_embedding(x, seg, word_tab, pos_tab, seg_tab, gamma, beta,
                   *, target_tile_tokens=16384):
    """x, seg: int32 [B, S].  Returns float32 [B, S, D_MODEL]."""
    B, S = x.shape
    assert S <= MAX_LEN, "sequence length exceeds positional table"
    N = B * S
    q = _choose_seqs_per_tile(B, S, target_tile_tokens)
    tm = S * q                  # tokens per grid step
    tm2 = tm // 2               # packed (2-token) rows per grid step
    grid = (N // tm,)

    # Pack (word_id, seg_id) of two consecutive tokens into one int32 column.
    # (Assumes in-range indices, like the reference; OOB ids are not checked.)
    tok_code = x.astype(jnp.int32) + VOCAB_SIZE * seg.astype(jnp.int32)    # [0, 8)
    pair = tok_code.reshape(N // 2, 2)
    codes = (pair[:, 0] + _PAIR_BASE * pair[:, 1]).reshape(N // 2, 1)      # [0, 64)

    # Resident positional slab for one tile, pair-packed along lanes.
    pos_idx = jnp.arange(tm, dtype=jnp.int32) % S
    pos_tile = pos_tab.astype(jnp.float32)[pos_idx].reshape(tm2, _LANES)   # (tm2, 128)

    # Combined word+segment table (8 rows, index = word + 4*seg), lane-tiled x2.
    wt = word_tab.astype(jnp.float32)
    st = seg_tab.astype(jnp.float32)
    ctab = (wt[None, :, :] + st[:, None, :]).reshape(N_SEGMENTS * VOCAB_SIZE, D_MODEL)
    ctab_p = jnp.tile(ctab, (1, 2))                                        # (8, 128)

    # Merged LayerNorm params and the block-diagonal averaging matrix.
    ln_p = jnp.stack([jnp.tile(gamma.astype(jnp.float32).reshape(D_MODEL), 2),
                      jnp.tile(beta.astype(jnp.float32).reshape(D_MODEL), 2)],
                     axis=0)                                               # (2, 128)
    half = jnp.arange(_LANES) // D_MODEL
    m_mat = (half[:, None] == half[None, :]).astype(jnp.float32) / D_MODEL  # (128,128)

    vmem_limit = min(48 * 1024 * 1024,
                     max(32 * 1024 * 1024, 6 * tm2 * 512 + 2 * 1024 * 1024))

    out_packed = pl.pallas_call(
        _embedding_ln_kernel,
        out_shape=jax.ShapeDtypeStruct((N // 2, _LANES), jnp.float32),
        grid_spec=pltpu.PrefetchScalarGridSpec(
            num_scalar_prefetch=0,
            grid=grid,
            in_specs=[
                pl.BlockSpec((tm2, 1), lambda i: (i, 0)),             # pair codes
                pl.BlockSpec((tm2, _LANES), lambda i: (0, 0)),        # pos slab (resident)
                pl.BlockSpec((N_SEGMENTS * VOCAB_SIZE, _LANES), lambda i: (0, 0)),
                pl.BlockSpec((2, _LANES), lambda i: (0, 0)),          # gamma/beta
                pl.BlockSpec((_LANES, _LANES), lambda i: (0, 0)),     # LN averaging matrix
            ],
            out_specs=pl.BlockSpec((tm2, _LANES), lambda i: (i, 0)),
        ),
        compiler_params=pltpu.CompilerParams(
            dimension_semantics=("parallel",),
            vmem_limit_bytes=vmem_limit,
        ),
    )(codes, pos_tile, ctab_p, ln_p, m_mat)

    # (N//2, 128) row-major is exactly (N, 64) row-major -> free reshape.
    return out_packed.reshape(B, S, D_MODEL)


def _reference(x, seg, word_tab, pos_tab, seg_tab, gamma, beta):
    B, S = x.shape
    positions = jnp.tile(jnp.arange(S)[None, :], (B, 1))
    emb = word_tab[x] + pos_tab[positions] + seg_tab[seg]
    mean = jnp.mean(emb, axis=-1, keepdims=True)
    var = jnp.mean((emb - mean) ** 2, axis=-1, keepdims=True)
    return (emb - mean) / jnp.sqrt(var + LN_EPS) * gamma + beta


if __name__ == "__main__":
    key = jax.random.PRNGKey(0)
    k_w, k_p, k_s, k_ids, k_seg = jax.random.split(key, 5)

    # Deterministic parameter init (nn.Embedding ~ N(0,1); LayerNorm gamma=1, beta=0)
    word_tab = jax.random.normal(k_w, (VOCAB_SIZE, D_MODEL), jnp.float32)
    pos_tab = jax.random.normal(k_p, (MAX_LEN, D_MODEL), jnp.float32)
    seg_tab = jax.random.normal(k_s, (N_SEGMENTS, D_MODEL), jnp.float32)
    gamma = jnp.ones((D_MODEL,), jnp.float32)
    beta = jnp.zeros((D_MODEL,), jnp.float32)

    # Small example inputs: batch=4, seq=8
    B, S = 4, 8
    x = jax.random.randint(k_ids, (B, S), 0, VOCAB_SIZE, dtype=jnp.int32)
    seg = jax.random.randint(k_seg, (B, S), 0, N_SEGMENTS, dtype=jnp.int32)

    out = bert_embedding(x, seg, word_tab, pos_tab, seg_tab, gamma, beta)
    out = jax.block_until_ready(out)

    ref = _reference(x, seg, word_tab, pos_tab, seg_tab, gamma, beta)
    assert out.shape == (B, S, D_MODEL)
    assert jnp.allclose(out, ref, atol=1e-4, rtol=1e-4)
    print("KERNEL_OK")
</pallas_src>

<mosaic_0001>
module attributes {stable_mosaic.version = 11 : i64} {
  func.func @_embedding_ln_kernel(%arg0: i32, %arg1: memref<8x1xi32, #tpu.memory_space<vmem>>, %arg2: memref<8x128xf32, #tpu.memory_space<vmem>>, %arg3: memref<8x128xf32, #tpu.memory_space<vmem>>, %arg4: memref<2x128xf32, #tpu.memory_space<vmem>>, %arg5: memref<128x128xf32, #tpu.memory_space<vmem>>, %arg6: memref<8x128xf32, #tpu.memory_space<vmem>>) attributes {dimension_semantics = [#tpu.dimension_semantics<parallel>], iteration_bounds = array<i64: 2>, scalar_prefetch = 0 : i64, scratch_operands = 0 : i64, tpu.core_type = #tpu.core_type<tc>, window_params = [{transform_indices = @transform_0, window_bounds = array<i64: 8, 1>}, {pipeline_mode = #tpu.pipeline_mode<synchronous>, transform_indices = @transform_1, window_bounds = array<i64: 8, 128>}, {pipeline_mode = #tpu.pipeline_mode<synchronous>, transform_indices = @transform_2, window_bounds = array<i64: 8, 128>}, {pipeline_mode = #tpu.pipeline_mode<synchronous>, transform_indices = @transform_3, window_bounds = array<i64: 2, 128>}, {pipeline_mode = #tpu.pipeline_mode<synchronous>, transform_indices = @transform_4, window_bounds = array<i64: 128, 128>}, {transform_indices = @transform_5, window_bounds = array<i64: 8, 128>}]} {
    %0 = tpu.iota {dimensions = array<i32: 1>} : vector<1x128xi32>
    %c64_i32 = arith.constant 64 : i32
    %1 = vector.broadcast %c64_i32 : i32 to vector<1x128xi32>
    %2 = arith.cmpi slt, %0, %1 : vector<1x128xi32>
    %c0 = arith.constant 0 : index
    %c0_0 = arith.constant 0 : index
    %3 = vector.load %arg1[%c0, %c0_0] : memref<8x1xi32, #tpu.memory_space<vmem>>, vector<8x1xi32>
    %c7_i32 = arith.constant 7 : i32
    %4 = vector.broadcast %c7_i32 : i32 to vector<8x1xi32>
    %5 = arith.andi %3, %4 : vector<8x1xi32>
    %c3_i32 = arith.constant 3 : i32
    %6 = vector.broadcast %c3_i32 : i32 to vector<8x1xi32>
    %7 = arith.shrsi %3, %6 : vector<8x1xi32>
    %8 = vector.shape_cast %2 : vector<1x128xi1> to vector<1x128xi1>
    %9 = vector.broadcast %8 : vector<1x128xi1> to vector<8x128xi1>
    %10 = vector.shape_cast %5 : vector<8x1xi32> to vector<8x1xi32>
    %11 = vector.broadcast %10 : vector<8x1xi32> to vector<8x128xi32>
    %12 = vector.shape_cast %7 : vector<8x1xi32> to vector<8x1xi32>
    %13 = vector.broadcast %12 : vector<8x1xi32> to vector<8x128xi32>
    %14 = arith.select %9, %11, %13 : vector<8x128xi1>, vector<8x128xi32>
    %c1_i32 = arith.constant 1 : i32
    %15 = vector.broadcast %c1_i32 : i32 to vector<8x128xi32>
    %16 = arith.andi %14, %15 : vector<8x128xi32>
    %c0_i32 = arith.constant 0 : i32
    %17 = vector.broadcast %c0_i32 : i32 to vector<8x128xi32>
    %18 = arith.cmpi ne, %16, %17 : vector<8x128xi32>
    %c2_i32 = arith.constant 2 : i32
    %19 = vector.broadcast %c2_i32 : i32 to vector<8x128xi32>
    %20 = arith.andi %14, %19 : vector<8x128xi32>
    %c0_i32_1 = arith.constant 0 : i32
    %21 = vector.broadcast %c0_i32_1 : i32 to vector<8x128xi32>
    %22 = arith.cmpi ne, %20, %21 : vector<8x128xi32>
    %c4_i32 = arith.constant 4 : i32
    %23 = vector.broadcast %c4_i32 : i32 to vector<8x128xi32>
    %24 = arith.andi %14, %23 : vector<8x128xi32>
    %c0_i32_2 = arith.constant 0 : i32
    %25 = vector.broadcast %c0_i32_2 : i32 to vector<8x128xi32>
    %26 = arith.cmpi ne, %24, %25 : vector<8x128xi32>
    %c1 = arith.constant 1 : index
    %c0_3 = arith.constant 0 : index
    %27 = vector.load %arg3[%c1, %c0_3] : memref<8x128xf32, #tpu.memory_space<vmem>>, vector<1x128xf32>
    %c0_4 = arith.constant 0 : index
    %c0_5 = arith.constant 0 : index
    %28 = vector.load %arg3[%c0_4, %c0_5] : memref<8x128xf32, #tpu.memory_space<vmem>>, vector<1x128xf32>
    %29 = vector.shape_cast %27 : vector<1x128xf32> to vector<1x128xf32>
    %30 = vector.broadcast %29 : vector<1x128xf32> to vector<8x128xf32>
    %31 = vector.shape_cast %28 : vector<1x128xf32> to vector<1x128xf32>
    %32 = vector.broadcast %31 : vector<1x128xf32> to vector<8x128xf32>
    %33 = arith.select %18, %30, %32 : vector<8x128xi1>, vector<8x128xf32>
    %c3 = arith.constant 3 : index
    %c0_6 = arith.constant 0 : index
    %34 = vector.load %arg3[%c3, %c0_6] : memref<8x128xf32, #tpu.memory_space<vmem>>, vector<1x128xf32>
    %c2 = arith.constant 2 : index
    %c0_7 = arith.constant 0 : index
    %35 = vector.load %arg3[%c2, %c0_7] : memref<8x128xf32, #tpu.memory_space<vmem>>, vector<1x128xf32>
    %36 = vector.shape_cast %34 : vector<1x128xf32> to vector<1x128xf32>
    %37 = vector.broadcast %36 : vector<1x128xf32> to vector<8x128xf32>
    %38 = vector.shape_cast %35 : vector<1x128xf32> to vector<1x128xf32>
    %39 = vector.broadcast %38 : vector<1x128xf32> to vector<8x128xf32>
    %40 = arith.select %18, %37, %39 : vector<8x128xi1>, vector<8x128xf32>
    %c5 = arith.constant 5 : index
    %c0_8 = arith.constant 0 : index
    %41 = vector.load %arg3[%c5, %c0_8] : memref<8x128xf32, #tpu.memory_space<vmem>>, vector<1x128xf32>
    %c4 = arith.constant 4 : index
    %c0_9 = arith.constant 0 : index
    %42 = vector.load %arg3[%c4, %c0_9] : memref<8x128xf32, #tpu.memory_space<vmem>>, vector<1x128xf32>
    %43 = vector.shape_cast %41 : vector<1x128xf32> to vector<1x128xf32>
    %44 = vector.broadcast %43 : vector<1x128xf32> to vector<8x128xf32>
    %45 = vector.shape_cast %42 : vector<1x128xf32> to vector<1x128xf32>
    %46 = vector.broadcast %45 : vector<1x128xf32> to vector<8x128xf32>
    %47 = arith.select %18, %44, %46 : vector<8x128xi1>, vector<8x128xf32>
    %c7 = arith.constant 7 : index
    %c0_10 = arith.constant 0 : index
    %48 = vector.load %arg3[%c7, %c0_10] : memref<8x128xf32, #tpu.memory_space<vmem>>, vector<1x128xf32>
    %c6 = arith.constant 6 : index
    %c0_11 = arith.constant 0 : index
    %49 = vector.load %arg3[%c6, %c0_11] : memref<8x128xf32, #tpu.memory_space<vmem>>, vector<1x128xf32>
    %50 = vector.shape_cast %48 : vector<1x128xf32> to vector<1x128xf32>
    %51 = vector.broadcast %50 : vector<1x128xf32> to vector<8x128xf32>
    %52 = vector.shape_cast %49 : vector<1x128xf32> to vector<1x128xf32>
    %53 = vector.broadcast %52 : vector<1x128xf32> to vector<8x128xf32>
    %54 = arith.select %18, %51, %53 : vector<8x128xi1>, vector<8x128xf32>
    %55 = arith.select %22, %40, %33 : vector<8x128xi1>, vector<8x128xf32>
    %56 = arith.select %22, %54, %47 : vector<8x128xi1>, vector<8x128xf32>
    %57 = arith.select %26, %56, %55 : vector<8x128xi1>, vector<8x128xf32>
    %c0_12 = arith.constant 0 : index
    %c0_13 = arith.constant 0 : index
    %58 = vector.load %arg2[%c0_12, %c0_13] : memref<8x128xf32, #tpu.memory_space<vmem>>, vector<8x128xf32>
    %59 = arith.addf %57, %58 : vector<8x128xf32>
    %c0_14 = arith.constant 0 : index
    %c0_15 = arith.constant 0 : index
    %60 = vector.load %arg5[%c0_14, %c0_15] : memref<128x128xf32, #tpu.memory_space<vmem>>, vector<128x128xf32>
    %cst = arith.constant dense<0.000000e+00> : vector<8x128xf32>
    %61 = tpu.matmul %59, %60, %cst {dimension_numbers = #tpu.dot_dimension_numbers<[1], [0], [0], [1], [0, 0, 1, 1], [], []>, precision = #tpu.contract_precision<fp32>} : vector<8x128xf32>, vector<128x128xf32>, vector<8x128xf32> -> vector<8x128xf32>
    %62 = arith.subf %59, %61 : vector<8x128xf32>
    %63 = arith.mulf %62, %62 : vector<8x128xf32>
    %c0_16 = arith.constant 0 : index
    %c0_17 = arith.constant 0 : index
    %64 = vector.load %arg5[%c0_16, %c0_17] : memref<128x128xf32, #tpu.memory_space<vmem>>, vector<128x128xf32>
    %cst_18 = arith.constant dense<0.000000e+00> : vector<8x128xf32>
    %65 = tpu.matmul %63, %64, %cst_18 {dimension_numbers = #tpu.dot_dimension_numbers<[1], [0], [0], [1], [0, 0, 1, 1], [], []>, precision = #tpu.contract_precision<fp32>} : vector<8x128xf32>, vector<128x128xf32>, vector<8x128xf32> -> vector<8x128xf32>
    %cst_19 = arith.constant 9.99999974E-6 : f32
    %66 = vector.broadcast %cst_19 : f32 to vector<8x128xf32>
    %67 = arith.addf %65, %66 : vector<8x128xf32>
    %68 = math.rsqrt %67 : vector<8x128xf32>
    %69 = arith.mulf %62, %68 : vector<8x128xf32>
    %c0_20 = arith.constant 0 : index
    %c0_21 = arith.constant 0 : index
    %70 = vector.load %arg4[%c0_20, %c0_21] : memref<2x128xf32, #tpu.memory_space<vmem>>, vector<1x128xf32>
    %71 = vector.broadcast %70 : vector<1x128xf32> to vector<8x128xf32>
    %72 = arith.mulf %69, %71 : vector<8x128xf32>
    %c1_22 = arith.constant 1 : index
    %c0_23 = arith.constant 0 : index
    %73 = vector.load %arg4[%c1_22, %c0_23] : memref<2x128xf32, #tpu.memory_space<vmem>>, vector<1x128xf32>
    %74 = vector.broadcast %73 : vector<1x128xf32> to vector<8x128xf32>
    %75 = arith.addf %72, %74 : vector<8x128xf32>
    %c0_24 = arith.constant 0 : index
    %c0_25 = arith.constant 0 : index
    %76 = vector.load %arg6[%c0_24, %c0_25] : memref<8x128xf32, #tpu.memory_space<vmem>>, vector<8x128xf32>
    tpu.vector_store %arg6[%c0_24, %c0_25], %75 {strides = array<i32>} : memref<8x128xf32, #tpu.memory_space<vmem>>, vector<8x128xf32>,
    return
  }
  func.func @transform_0(%arg0: i32) -> (i32, i32) {
    %c0_i32 = arith.constant 0 : i32
    %c0_i32_0 = arith.constant 0 : i32
    return %arg0, %c0_i32 : i32, i32
  }
  func.func @transform_1(%arg0: i32) -> (i32, i32) {
    %c0_i32 = arith.constant 0 : i32
    %c0_i32_0 = arith.constant 0 : i32
    %c0_i32_1 = arith.constant 0 : i32
    return %c0_i32, %c0_i32_0 : i32, i32
  }
  func.func @transform_2(%arg0: i32) -> (i32, i32) {
    %c0_i32 = arith.constant 0 : i32
    %c0_i32_0 = arith.constant 0 : i32
    %c0_i32_1 = arith.constant 0 : i32
    return %c0_i32, %c0_i32_0 : i32, i32
  }
  func.func @transform_3(%arg0: i32) -> (i32, i32) {
    %c0_i32 = arith.constant 0 : i32
    %c0_i32_0 = arith.constant 0 : i32
    %c0_i32_1 = arith.constant 0 : i32
    return %c0_i32, %c0_i32_0 : i32, i32
  }
  func.func @transform_4(%arg0: i32) -> (i32, i32) {
    %c0_i32 = arith.constant 0 : i32
    %c0_i32_0 = arith.constant 0 : i32
    %c0_i32_1 = arith.constant 0 : i32
    return %c0_i32, %c0_i32_0 : i32, i32
  }
  func.func @transform_5(%arg0: i32) -> (i32, i32) {
    %c0_i32 = arith.constant 0 : i32
    %c0_i32_0 = arith.constant 0 : i32
    return %arg0, %c0_i32 : i32, i32
  }
}

</mosaic_0001>

<llo_original>
// kernel: tpu_custom_call.1
$region0: #{tpu_custom_call.1}
  #allocation0 [shape = 'u32[]', space=smem, size = 0x4, offset = 0x4, fixed_abs, tag = 'smem constant byte address 0x4 - core index']
  #allocation1 [shape = 'u32[144,128]{1,0:T(1,128)}', space=vmem, size = 0x12000, scoped, tag = 'internal scratch']
  %s0 = inlined_call_operand.vmem [shape: s32[16,1], index: 0, kind: input, shape index: {}]
  %s1 = inlined_call_operand.vmem [shape: f32[8,128], index: 1, kind: input, shape index: {}]
  %s2 = inlined_call_operand.vmem [shape: f32[8,128], index: 2, kind: input, shape index: {}]
  %s3 = inlined_call_operand.vmem [shape: f32[2,128], index: 3, kind: input, shape index: {}]
  %s4 = inlined_call_operand.hbm [shape: f32[128,128], index: 4, kind: input, shape index: {}]
  %s5 = inlined_call_operand.hbm [shape: f32[16,128], index: 5, kind: output, shape index: {}]
  %s6 = sld [smem:[#allocation0]]
  $region57: #{tpu_custom_call.1} parent=0
    _
  %s8 = ssub.s32 1, %s6
  %s9 = scalar_select 0, %s8, %s6
  $region1: #{tpu_custom_call.1} parent=0
    #allocation2 [shape = 'u8[65536]{0}', space=vmem, size = 0x10000, scoped, tag = 'input window, operand 4, single buffered']
    #allocation3 [shape = 's32[2]{0}', space=sflag, size = 0x8, scoped, tag = 'scoped memory for tpu_custom_call.1']
    #allocation4 [shape = 's32[2]{0}', space=sflag, size = 0x8, scoped, tag = 'scoped memory for tpu_custom_call.1']
    #allocation5 [shape = 'u8[8192]{0}', space=vmem, size = 0x2000, scoped, tag = 'output window, operand 0']
    %10 = vsyncpa [#allocation3], 0
    %11 = vsyncpa [#allocation4], 0
    %s12 = scalar_lea.sflag [#allocation4], 1
    %13 = vsyncpa %s12, 0
    loop: start=0, step=1, limit=4
    $region2: #{tpu_custom_call.1} parent=1 // loop_pre_header
      _
    $region3: #{tpu_custom_call.1} parent=1 // loop_header
      %s15 = sphi 0, %s19
      %p16 = scmp.ge.s32.totalorder %s15, 4
      %s25 = sphi 0, %s27
      %s28 = sphi 0, %s25
      %s29 = sphi 0, %s28
      %s45 = sphi 0, %s29
      %s49 = sphi 0, %s49
      %s51 = sphi 0, %s49
      %s52 = sphi 0, %s51
      %s66 = sphi 0, %s52
      %s70 = sphi 0, %s70
      %s72 = sphi 0, %s70
      %s73 = sphi 0, %s72
      %s87 = sphi 0, %s73
      %s91 = sphi 0, %s91
      %s93 = sphi 0, %s91
      %s94 = sphi 0, %s93
      %s108 = sphi 0, %s94
      %s112 = sphi 0, %s112
      %s114 = sphi 0, %s112
      %s115 = sphi 0, %s114
      %s129 = sphi 0, %s115
      %s135 = sphi 0, %s137
      %s138 = sphi 0, %s135
      %s139 = sphi 0, %s138
      %s155 = sphi 0, %s139
    $region4: #{tpu_custom_call.1} parent=1 // loop_header_branch
      %18 = sbr.rel (%p16) target = $region8
    $region5: #{tpu_custom_call.1} parent=1 // loop_body
      %s20 = ssub.s32 %s15, 1
      %s21 = ssub.s32 %s15, 2
      %s22 = sadd.s32 %s15, 1
      %s23 = ssub.s32 %s15, %s22
      %p24 = scmp.eq.s32.totalorder %s23, 0
      %s26 = sadd.s32 %s25, 1
      %s27 = scalar_select %p24, %s25, %s26
      %p30 = pneg %p24
      %p31 = scmp.eq.s32.totalorder %s15, 1
      %p32 = por %p30, %p31
      %p33 = scmp.ne.s32.totalorder %s25, %s28
      %p34 = scmp.eq.s32.totalorder %s15, 0
      %p35 = por %p33, %p34
      %p36 = scmp.ne.s32.totalorder %s25, %s28
      %p37 = scmp.eq.s32.totalorder %s20, 1
      %p38 = por %p36, %p37
      %p39 = scmp.ne.s32.totalorder %s28, %s29
      %p40 = scmp.eq.s32.totalorder %s20, 0
      %p41 = por %p39, %p40
      %p42 = scmp.ne.s32.totalorder %s28, %s29
      %p43 = scmp.eq.s32.totalorder %s21, 1
      %p44 = por %p42, %p43
      %p46 = scmp.ne.s32.totalorder %s29, %s45
      %p47 = scmp.eq.s32.totalorder %s21, 0
      %p48 = por %p46, %p47
      %s50 = sadd.s32 %s49, 1
      %p53 = scmp.eq.s32.totalorder %s15, 1
      %p54 = scmp.ne.s32.totalorder %s49, %s51
      %p55 = scmp.eq.s32.totalorder %s15, 0
      %p56 = por %p54, %p55
      %p57 = scmp.ne.s32.totalorder %s49, %s51
      %p58 = scmp.eq.s32.totalorder %s20, 1
      %p59 = por %p57, %p58
      %p60 = scmp.ne.s32.totalorder %s51, %s52
      %p61 = scmp.eq.s32.totalorder %s20, 0
      %p62 = por %p60, %p61
      %p63 = scmp.ne.s32.totalorder %s51, %s52
      %p64 = scmp.eq.s32.totalorder %s21, 1
      %p65 = por %p63, %p64
      %p67 = scmp.ne.s32.totalorder %s52, %s66
      %p68 = scmp.eq.s32.totalorder %s21, 0
      %p69 = por %p67, %p68
      %s71 = sadd.s32 %s70, 1
      %p74 = scmp.eq.s32.totalorder %s15, 1
      %p75 = scmp.ne.s32.totalorder %s70, %s72
      %p76 = scmp.eq.s32.totalorder %s15, 0
      %p77 = por %p75, %p76
      %p78 = scmp.ne.s32.totalorder %s70, %s72
      %p79 = scmp.eq.s32.totalorder %s20, 1
      %p80 = por %p78, %p79
      %p81 = scmp.ne.s32.totalorder %s72, %s73
      %p82 = scmp.eq.s32.totalorder %s20, 0
      %p83 = por %p81, %p82
      %p84 = scmp.ne.s32.totalorder %s72, %s73
      %p85 = scmp.eq.s32.totalorder %s21, 1
      %p86 = por %p84, %p85
      %p88 = scmp.ne.s32.totalorder %s73, %s87
      %p89 = scmp.eq.s32.totalorder %s21, 0
      %p90 = por %p88, %p89
      %s92 = sadd.s32 %s91, 1
      %p95 = scmp.eq.s32.totalorder %s15, 1
      %p96 = scmp.ne.s32.totalorder %s91, %s93
      %p97 = scmp.eq.s32.totalorder %s15, 0
      %p98 = por %p96, %p97
      %p99 = scmp.ne.s32.totalorder %s91, %s93
      %p100 = scmp.eq.s32.totalorder %s20, 1
      %p101 = por %p99, %p100
      %p102 = scmp.ne.s32.totalorder %s93, %s94
      %p103 = scmp.eq.s32.totalorder %s20, 0
      %p104 = por %p102, %p103
      %p105 = scmp.ne.s32.totalorder %s93, %s94
      %p106 = scmp.eq.s32.totalorder %s21, 1
      %p107 = por %p105, %p106
      %p109 = scmp.ne.s32.totalorder %s94, %s108
      %p110 = scmp.eq.s32.totalorder %s21, 0
      %p111 = por %p109, %p110
      %s113 = sadd.s32 %s112, 1
      %p116 = scmp.eq.s32.totalorder %s15, 1
      %p117 = scmp.ne.s32.totalorder %s112, %s114
      %p118 = scmp.eq.s32.totalorder %s15, 0
      %p119 = por %p117, %p118
      %p120 = scmp.ne.s32.totalorder %s112, %s114
      %p121 = scmp.eq.s32.totalorder %s20, 1
      %p122 = por %p120, %p121
      %p123 = scmp.ne.s32.totalorder %s114, %s115
      %p124 = scmp.eq.s32.totalorder %s20, 0
      %p125 = por %p123, %p124
      %p126 = scmp.ne.s32.totalorder %s114, %s115
      %p127 = scmp.eq.s32.totalorder %s21, 1
      %p128 = por %p126, %p127
      %p130 = scmp.ne.s32.totalorder %s115, %s129
      %p131 = scmp.eq.s32.totalorder %s21, 0
      %p132 = por %p130, %p131
      %s133 = ssub.s32 %s15, %s22
      %p134 = scmp.eq.s32.totalorder %s133, 0
      %s136 = sadd.s32 %s135, 1
      %s137 = scalar_select %p134, %s135, %s136
      %p140 = pneg %p134
      %p141 = scmp.eq.s32.totalorder %s15, 1
      %p142 = por %p140, %p141
      %p143 = scmp.ne.s32.totalorder %s135, %s138
      %p144 = scmp.eq.s32.totalorder %s15, 0
      %p145 = por %p143, %p144
      %p146 = scmp.ne.s32.totalorder %s135, %s138
      %p147 = scmp.eq.s32.totalorder %s20, 1
      %p148 = por %p146, %p147
      %p149 = scmp.ne.s32.totalorder %s138, %s139
      %p150 = scmp.eq.s32.totalorder %s20, 0
      %p151 = por %p149, %p150
      %p152 = scmp.ne.s32.totalorder %s138, %s139
      %p153 = scmp.eq.s32.totalorder %s21, 1
      %p154 = por %p152, %p153
      %p156 = scmp.ne.s32.totalorder %s139, %s155
      %p157 = scmp.eq.s32.totalorder %s21, 0
      %p158 = por %p156, %p157
      %p159 = scmp.le.s32.totalorder 1, %s15
      %p160 = scmp.lt.s32.totalorder %s15, 3
      %p161 = pnand %p159, %p160
      %p162 = pneg %p161
      // Predicated region
      $region9: #{tpu_custom_call.1} parent=5 // pred_check
        _
      $region10: #{tpu_custom_call.1} parent=5 // pred_check_branch
        %164 = sbr.rel (%p161) target = $region12
      $region11: #{tpu_custom_call.1} parent=5 // pred_region
        %s165 = ssub.s32 %s15, 1
        // Predicated region
        $region13: #{tpu_custom_call.1} parent=11 // pred_check
          %p166 = pneg %p62
        $region14: #{tpu_custom_call.1} parent=11 // pred_check_branch
          %168 = sbr.rel (%p166) target = $region16
        $region15: #{tpu_custom_call.1} parent=11 // pred_region
          _
        $region16: #{tpu_custom_call.1} parent=11 // pred_fallthru
          _
        // Predicated region
        $region17: #{tpu_custom_call.1} parent=11 // pred_check
          %p169 = pneg %p83
        $region18: #{tpu_custom_call.1} parent=11 // pred_check_branch
          %171 = sbr.rel (%p169) target = $region20
        $region19: #{tpu_custom_call.1} parent=11 // pred_region
          _
        $region20: #{tpu_custom_call.1} parent=11 // pred_fallthru
          _
        // Predicated region
        $region21: #{tpu_custom_call.1} parent=11 // pred_check
          %p172 = pneg %p104
        $region22: #{tpu_custom_call.1} parent=11 // pred_check_branch
          %174 = sbr.rel (%p172) target = $region24
        $region23: #{tpu_custom_call.1} parent=11 // pred_region
          _
        $region24: #{tpu_custom_call.1} parent=11 // pred_fallthru
          _
        // Predicated region
        $region25: #{tpu_custom_call.1} parent=11 // pred_check
          %p175 = pneg %p125
        $region26: #{tpu_custom_call.1} parent=11 // pred_check_branch
          %177 = sbr.rel (%p175) target = $region28
        $region27: #{tpu_custom_call.1} parent=11 // pred_region
          %s179 = ssub.s32 2048, 2048
          %180 = vsyncadd [#allocation3], %s179
          %s181 = sshll.u32 [#allocation2], 4
          %s182 = int_to_ptr.vmem [resolvable:$true] %s181
          %187 = dma.hbm_to_vmem [thread:$0]  %s4, 2048, %s182, [#allocation3], 128, 128, 8
        $region28: #{tpu_custom_call.1} parent=11 // pred_fallthru
          _
      $region12: #{tpu_custom_call.1} parent=5 // pred_fallthru
        _
      %p188 = scmp.lt.s32.totalorder %s15, 2
      // Predicated region
      $region29: #{tpu_custom_call.1} parent=5 // pred_check
        %p189 = pneg %p188
      $region30: #{tpu_custom_call.1} parent=5 // pred_check_branch
        %191 = sbr.rel (%p189) target = $region32
      $region31: #{tpu_custom_call.1} parent=5 // pred_region
        // Predicated region
        $region33: #{tpu_custom_call.1} parent=31 // pred_check
          %p192 = pneg %p35
        $region34: #{tpu_custom_call.1} parent=31 // pred_check_branch
          %194 = sbr.rel (%p192) target = $region36
        $region35: #{tpu_custom_call.1} parent=31 // pred_region
          %p195 = scmp.lt.s32.totalorder %s15, 1
          %s196 = scalar_select %p195, %s15, 1
          %s197 = smul.addr %s196, 8
          %s198 = scalar_lea.vmem %s0, %s197
        $region36: #{tpu_custom_call.1} parent=31 // pred_fallthru
          _
      $region32: #{tpu_custom_call.1} parent=5 // pred_fallthru
        _
      %p199 = scmp.le.s32.totalorder 1, %s15
      %p200 = scmp.lt.s32.totalorder %s15, 3
      %p201 = pnand %p199, %p200
      %p202 = pneg %p201
      // Predicated region
      $region37: #{tpu_custom_call.1} parent=5 // pred_check
        _
      $region38: #{tpu_custom_call.1} parent=5 // pred_check_branch
        %204 = sbr.rel (%p201) target = $region40
      $region39: #{tpu_custom_call.1} parent=5 // pred_region
        %s205 = ssub.s32 %s15, 1
        // Predicated region
        $region41: #{tpu_custom_call.1} parent=39 // pred_check
          %p206 = pneg %p125
        $region42: #{tpu_custom_call.1} parent=39 // pred_check_branch
          %208 = sbr.rel (%p206) target = $region44
        $region43: #{tpu_custom_call.1} parent=39 // pred_region
          %209 = dma.done [#allocation3], 2048
        $region44: #{tpu_custom_call.1} parent=39 // pred_fallthru
          _
        %p210 = scmp.lt.s32.totalorder %s20, 1
        %s211 = scalar_select %p210, %s20, 1
        %s212 = smul.addr %s211, 8
        %s213 = scalar_lea.vmem %s0, %s212
        %p214 = pneg %p41
        %p215 = pneg %p38
        %p216 = pneg %p62
        %p217 = pneg %p59
        %p218 = pneg %p83
        %p219 = pneg %p80
        %p220 = pneg %p104
        %p221 = pneg %p101
        %p222 = pneg %p125
        %p223 = pneg %p122
        %p224 = pneg %p151
        %p225 = pneg %p148
        %s226 = sand.u32 %s138, 1
        %s227 = scalar_lea.sflag [#allocation4], %s226
        %s228 = sand.u32 %s138, 1
        %s229 = smul.addr %s228, 8
        %s230 = scalar_lea.vmem [#allocation5], %s229
        %p231 = scmp.lt.s32.totalorder %s20, 1
        %s232 = scalar_select %p231, %s20, 1
        %s233 = smul.addr %s232, 8
        %s234 = scalar_lea.vmem %s0, %s233
        %v235 = vlaneseq
        %v236 = vand.u32 %v235, 127
        %vm237 = vcmp.lt.s32.totalorder %v236, 64
        %v238 = vld [vmem:[%s234] sm:$0xff]
        %v239 = vand.u32 %v238, 7
        %v240 = vshra.s32 %v238, 3
        %v241 = vsel %vm237, 1, 0
        %vm242 = vcmp.eq.s32.totalorder %v241, 1
        %243 = vset.pattern.permute.xlu0 0
        %244 = vperm.xlu0 %243, %v239
        %v245 = vpop.permute.xlu0 %244
        %246 = vset.pattern.permute.xlu0 0
        %247 = vperm.xlu0 %246, %v240
        %v248 = vpop.permute.xlu0 %247
        %v249 = vsel %vm242, %v245, %v248
        %v250 = vand.u32 %v249, 1
        %vm251 = vcmp.ne.s32.totalorder %v250, 0
        %v252 = vand.u32 %v249, 2
        %vm253 = vcmp.ne.s32.totalorder %v252, 0
        %v254 = vand.u32 %v249, 4
        %vm255 = vcmp.ne.s32.totalorder %v254, 0
        %v256 = vld [vmem:[%s2 + $0x1] sm:$0x1]
        %v257 = vld [vmem:[%s2] sm:$0x1]
        %v258 = vlaneseq
        %v259 = vshrl.u32 %v258, 7
        %v260 = vsub.s32 0, %v259
        %v261 = vrot.slane %v256, %v260
        %v262 = vlaneseq
        %v263 = vshrl.u32 %v262, 7
        %v264 = vsub.s32 0, %v263
        %v265 = vrot.slane %v257, %v264
        %v266 = vsel %vm251, %v261, %v265
        %v267 = vld [vmem:[%s2 + $0x3] sm:$0x1]
        %v268 = vld [vmem:[%s2 + $0x2] sm:$0x1]
        %v269 = vlaneseq
        %v270 = vshrl.u32 %v269, 7
        %v271 = vsub.s32 0, %v270
        %v272 = vrot.slane %v267, %v271
        %v273 = vlaneseq
        %v274 = vshrl.u32 %v273, 7
        %v275 = vsub.s32 0, %v274
        %v276 = vrot.slane %v268, %v275
        %v277 = vsel %vm251, %v272, %v276
        %v278 = vld [vmem:[%s2 + $0x5] sm:$0x1]
        %v279 = vld [vmem:[%s2 + $0x4] sm:$0x1]
        %v280 = vlaneseq
        %v281 = vshrl.u32 %v280, 7
        %v282 = vsub.s32 0, %v281
        %v283 = vrot.slane %v278, %v282
        %v284 = vlaneseq
        %v285 = vshrl.u32 %v284, 7
        %v286 = vsub.s32 0, %v285
        %v287 = vrot.slane %v279, %v286
        %v288 = vsel %vm251, %v283, %v287
        %v289 = vld [vmem:[%s2 + $0x7] sm:$0x1]
        %v290 = vld [vmem:[%s2 + $0x6] sm:$0x1]
        %v291 = vlaneseq
        %v292 = vshrl.u32 %v291, 7
        %v293 = vsub.s32 0, %v292
        %v294 = vrot.slane %v289, %v293
        %v295 = vlaneseq
        %v296 = vshrl.u32 %v295, 7
        %v297 = vsub.s32 0, %v296
        %v298 = vrot.slane %v290, %v297
        %v299 = vsel %vm251, %v294, %v298
        %v300 = vsel %vm253, %v277, %v266
        %v301 = vsel %vm253, %v299, %v288
        %v302 = vsel %vm255, %v301, %v300
        %v303 = vld [vmem:[%s1] sm:$0xff]
        %v304 = vadd.f32 %v302, %v303
        %v305 = vld [vmem:[#allocation2] sm:$0xff]
        %v306 = vld [vmem:[#allocation2 + $0x8] sm:$0xff]
        %v307 = vld [vmem:[#allocation2 + $0x10] sm:$0xff]
        %v308 = vld [vmem:[#allocation2 + $0x18] sm:$0xff]
        %v309 = vld [vmem:[#allocation2 + $0x20] sm:$0xff]
        %v310 = vld [vmem:[#allocation2 + $0x28] sm:$0xff]
        %v311 = vld [vmem:[#allocation2 + $0x30] sm:$0xff]
        %v312 = vld [vmem:[#allocation2 + $0x38] sm:$0xff]
        %v313 = vld [vmem:[#allocation2 + $0x40] sm:$0xff]
        %v314 = vld [vmem:[#allocation2 + $0x48] sm:$0xff]
        %v315 = vld [vmem:[#allocation2 + $0x50] sm:$0xff]
        %v316 = vld [vmem:[#allocation2 + $0x58] sm:$0xff]
        %v317 = vld [vmem:[#allocation2 + $0x60] sm:$0xff]
        %v318 = vld [vmem:[#allocation2 + $0x68] sm:$0xff]
        %v319 = vld [vmem:[#allocation2 + $0x70] sm:$0xff]
        %v320 = vld [vmem:[#allocation2 + $0x78] sm:$0xff]
        %321 = vmatprep.subr.mxu0 0.0
        %v322 = vand.u32 %v305, 4294901760
        %323 = vmatpush1.msra.mxu0 %v322
        %324 = vmatprep.subr.mxu0 0.0
        %v325 = vand.u32 %v306, 4294901760
        %326 = vmatpush1.msra.mxu0 %v325
        %327 = vmatprep.subr.mxu0 0.0
        %v328 = vand.u32 %v307, 4294901760
        %329 = vmatpush1.msra.mxu0 %v328
        %330 = vmatprep.subr.mxu0 0.0
        %v331 = vand.u32 %v308, 4294901760
        %332 = vmatpush1.msra.mxu0 %v331
        %333 = vmatprep.subr.mxu0 0.0
        %v334 = vand.u32 %v309, 4294901760
        %335 = vmatpush1.msra.mxu0 %v334
        %336 = vmatprep.subr.mxu0 0.0
        %v337 = vand.u32 %v310, 4294901760
        %338 = vmatpush1.msra.mxu0 %v337
        %339 = vmatprep.subr.mxu0 0.0
        %v340 = vand.u32 %v311, 4294901760
        %341 = vmatpush1.msra.mxu0 %v340
        %342 = vmatprep.subr.mxu0 0.0
        %v343 = vand.u32 %v312, 4294901760
        %344 = vmatpush1.msra.mxu0 %v343
        %345 = vmatprep.subr.mxu0 0.0
        %v346 = vand.u32 %v313, 4294901760
        %347 = vmatpush1.msra.mxu0 %v346
        %348 = vmatprep.subr.mxu0 0.0
        %v349 = vand.u32 %v314, 4294901760
        %350 = vmatpush1.msra.mxu0 %v349
        %351 = vmatprep.subr.mxu0 0.0
        %v352 = vand.u32 %v315, 4294901760
        %353 = vmatpush1.msra.mxu0 %v352
        %354 = vmatprep.subr.mxu0 0.0
        %v355 = vand.u32 %v316, 4294901760
        %356 = vmatpush1.msra.mxu0 %v355
        %357 = vmatprep.subr.mxu0 0.0
        %v358 = vand.u32 %v317, 4294901760
        %359 = vmatpush1.msra.mxu0 %v358
        %360 = vmatprep.subr.mxu0 0.0
        %v361 = vand.u32 %v318, 4294901760
        %362 = vmatpush1.msra.mxu0 %v361
        %363 = vmatprep.subr.mxu0 0.0
        %v364 = vand.u32 %v319, 4294901760
        %365 = vmatpush1.msra.mxu0 %v364
        %366 = vmatprep.subr.mxu0 0.0
        %v367 = vand.u32 %v320, 4294901760
        %368 = vmatpush1.msra.mxu0 %v367
        %369 = vmatprep.subr.mxu0 0.0
        %370 = vmatpush1.msra.mxu0 0.0
        %371 = vmatprep.subr.mxu0 0.0
        %372 = vmatpush1.msra.mxu0 0.0
        %373 = vmatprep.subr.mxu0 0.0
        %374 = vmatpush1.msra.mxu0 0.0
        %375 = vmatprep.subr.mxu0 0.0
        %376 = vmatpush1.msra.mxu0 0.0
        %377 = vmatprep.subr.mxu0 0.0
        %378 = vmatpush1.msra.mxu0 0.0
        %379 = vmatprep.subr.mxu0 0.0
        %380 = vmatpush1.msra.mxu0 0.0
        %381 = vmatprep.subr.mxu0 0.0
        %382 = vmatpush1.msra.mxu0 0.0
        %383 = vmatprep.subr.mxu0 0.0
        %384 = vmatpush1.msra.mxu0 0.0
        %385 = vmatprep.subr.mxu0 0.0
        %386 = vmatpush1.msra.mxu0 0.0
        %387 = vmatprep.subr.mxu0 0.0
        %388 = vmatpush1.msra.mxu0 0.0
        %389 = vmatprep.subr.mxu0 0.0
        %390 = vmatpush1.msra.mxu0 0.0
        %391 = vmatprep.subr.mxu0 0.0
        %392 = vmatpush1.msra.mxu0 0.0
        %393 = vmatprep.subr.mxu0 0.0
        %394 = vmatpush1.msra.mxu0 0.0
        %395 = vmatprep.subr.mxu0 0.0
        %396 = vmatpush1.msra.mxu0 0.0
        %397 = vmatprep.subr.mxu0 0.0
        %398 = vmatpush1.msra.mxu0 0.0
        %399 = vmatprep.subr.mxu0 0.0
        %400 = vmatpush1.msra.mxu0 0.0
        %401 = vmatprep.mubr.f32.mxu0 0.0
        %v402 = vand.u32 %v304, 4294901760
        %v403 = vsub.f32 %v304, %v402
        %v404 = vand.u32 %v403, 4294901760
        %v405 = vsub.f32 %v403, %v404
        %v406 = vand.u32 %v405, 4294901760
        %407 = vmatmul.mubr.f32.gmra.mrb[0].mxu0 %v406
        %v408 = vpop.f32.mrb[0].mxu0
        %v409 = vadd.f32 0.0, %v408
        %v410 = vpop.f32.mrb[0].mxu0
        %411 = vdwg.mxu0
        %412 = vmatprep.subr.mxu0 0.0
        %v413 = vand.u32 %v305, 4294901760
        %v414 = vsub.f32 %v305, %v413
        %v415 = vand.u32 %v414, 4294901760
        %v416 = vsub.f32 %v414, %v415
        %v417 = vand.u32 %v416, 4294901760
        %418 = vmatpush1.msra.mxu0 %v417
        %419 = vmatprep.subr.mxu0 0.0
        %v420 = vand.u32 %v306, 4294901760
        %v421 = vsub.f32 %v306, %v420
        %v422 = vand.u32 %v421, 4294901760
        %v423 = vsub.f32 %v421, %v422
        %v424 = vand.u32 %v423, 4294901760
        %425 = vmatpush1.msra.mxu0 %v424
        %426 = vmatprep.subr.mxu0 0.0
        %v427 = vand.u32 %v307, 4294901760
        %v428 = vsub.f32 %v307, %v427
        %v429 = vand.u32 %v428, 4294901760
        %v430 = vsub.f32 %v428, %v429
        %v431 = vand.u32 %v430, 4294901760
        %432 = vmatpush1.msra.mxu0 %v431
        %433 = vmatprep.subr.mxu0 0.0
        %v434 = vand.u32 %v308, 4294901760
        %v435 = vsub.f32 %v308, %v434
        %v436 = vand.u32 %v435, 4294901760
        %v437 = vsub.f32 %v435, %v436
        %v438 = vand.u32 %v437, 4294901760
        %439 = vmatpush1.msra.mxu0 %v438
        %440 = vmatprep.subr.mxu0 0.0
        %v441 = vand.u32 %v309, 4294901760
        %v442 = vsub.f32 %v309, %v441
        %v443 = vand.u32 %v442, 4294901760
        %v444 = vsub.f32 %v442, %v443
        %v445 = vand.u32 %v444, 4294901760
        %446 = vmatpush1.msra.mxu0 %v445
        %447 = vmatprep.subr.mxu0 0.0
        %v448 = vand.u32 %v310, 4294901760
        %v449 = vsub.f32 %v310, %v448
        %v450 = vand.u32 %v449, 4294901760
        %v451 = vsub.f32 %v449, %v450
        %v452 = vand.u32 %v451, 4294901760
        %453 = vmatpush1.msra.mxu0 %v452
        %454 = vmatprep.subr.mxu0 0.0
        %v455 = vand.u32 %v311, 4294901760
        %v456 = vsub.f32 %v311, %v455
        %v457 = vand.u32 %v456, 4294901760
        %v458 = vsub.f32 %v456, %v457
        %v459 = vand.u32 %v458, 4294901760
        %460 = vmatpush1.msra.mxu0 %v459
        %461 = vmatprep.subr.mxu0 0.0
        %v462 = vand.u32 %v312, 4294901760
        %v463 = vsub.f32 %v312, %v462
        %v464 = vand.u32 %v463, 4294901760
        %v465 = vsub.f32 %v463, %v464
        %v466 = vand.u32 %v465, 4294901760
        %467 = vmatpush1.msra.mxu0 %v466
        %468 = vmatprep.subr.mxu0 0.0
        %v469 = vand.u32 %v313, 4294901760
        %v470 = vsub.f32 %v313, %v469
        %v471 = vand.u32 %v470, 4294901760
        %v472 = vsub.f32 %v470, %v471
        %v473 = vand.u32 %v472, 4294901760
        %474 = vmatpush1.msra.mxu0 %v473
        %475 = vmatprep.subr.mxu0 0.0
        %v476 = vand.u32 %v314, 4294901760
        %v477 = vsub.f32 %v314, %v476
        %v478 = vand.u32 %v477, 4294901760
        %v479 = vsub.f32 %v477, %v478
        %v480 = vand.u32 %v479, 4294901760
        %481 = vmatpush1.msra.mxu0 %v480
        %482 = vmatprep.subr.mxu0 0.0
        %v483 = vand.u32 %v315, 4294901760
        %v484 = vsub.f32 %v315, %v483
        %v485 = vand.u32 %v484, 4294901760
        %v486 = vsub.f32 %v484, %v485
        %v487 = vand.u32 %v486, 4294901760
        %488 = vmatpush1.msra.mxu0 %v487
        %489 = vmatprep.subr.mxu0 0.0
        %v490 = vand.u32 %v316, 4294901760
        %v491 = vsub.f32 %v316, %v490
        %v492 = vand.u32 %v491, 4294901760
        %v493 = vsub.f32 %v491, %v492
        %v494 = vand.u32 %v493, 4294901760
        %495 = vmatpush1.msra.mxu0 %v494
        %496 = vmatprep.subr.mxu0 0.0
        %v497 = vand.u32 %v317, 4294901760
        %v498 = vsub.f32 %v317, %v497
        %v499 = vand.u32 %v498, 4294901760
        %v500 = vsub.f32 %v498, %v499
        %v501 = vand.u32 %v500, 4294901760
        %502 = vmatpush1.msra.mxu0 %v501
        %503 = vmatprep.subr.mxu0 0.0
        %v504 = vand.u32 %v318, 4294901760
        %v505 = vsub.f32 %v318, %v504
        %v506 = vand.u32 %v505, 4294901760
        %v507 = vsub.f32 %v505, %v506
        %v508 = vand.u32 %v507, 4294901760
        %509 = vmatpush1.msra.mxu0 %v508
        %510 = vmatprep.subr.mxu0 0.0
        %v511 = vand.u32 %v319, 4294901760
        %v512 = vsub.f32 %v319, %v511
        %v513 = vand.u32 %v512, 4294901760
        %v514 = vsub.f32 %v512, %v513
        %v515 = vand.u32 %v514, 4294901760
        %516 = vmatpush1.msra.mxu0 %v515
        %517 = vmatprep.subr.mxu0 0.0
        %v518 = vand.u32 %v320, 4294901760
        %v519 = vsub.f32 %v320, %v518
        %v520 = vand.u32 %v519, 4294901760
        %v521 = vsub.f32 %v519, %v520
        %v522 = vand.u32 %v521, 4294901760
        %523 = vmatpush1.msra.mxu0 %v522
        %524 = vmatprep.subr.mxu0 0.0
        %525 = vmatpush1.msra.mxu0 0.0
        %526 = vmatprep.subr.mxu0 0.0
        %527 = vmatpush1.msra.mxu0 0.0
        %528 = vmatprep.subr.mxu0 0.0
        %529 = vmatpush1.msra.mxu0 0.0
        %530 = vmatprep.subr.mxu0 0.0
        %531 = vmatpush1.msra.mxu0 0.0
        %532 = vmatprep.subr.mxu0 0.0
        %533 = vmatpush1.msra.mxu0 0.0
        %534 = vmatprep.subr.mxu0 0.0
        %535 = vmatpush1.msra.mxu0 0.0
        %536 = vmatprep.subr.mxu0 0.0
        %537 = vmatpush1.msra.mxu0 0.0
        %538 = vmatprep.subr.mxu0 0.0
        %539 = vmatpush1.msra.mxu0 0.0
        %540 = vmatprep.subr.mxu0 0.0
        %541 = vmatpush1.msra.mxu0 0.0
        %542 = vmatprep.subr.mxu0 0.0
        %543 = vmatpush1.msra.mxu0 0.0
        %544 = vmatprep.subr.mxu0 0.0
        %545 = vmatpush1.msra.mxu0 0.0
        %546 = vmatprep.subr.mxu0 0.0
        %547 = vmatpush1.msra.mxu0 0.0
        %548 = vmatprep.subr.mxu0 0.0
        %549 = vmatpush1.msra.mxu0 0.0
        %550 = vmatprep.subr.mxu0 0.0
        %551 = vmatpush1.msra.mxu0 0.0
        %552 = vmatprep.subr.mxu0 0.0
        %553 = vmatpush1.msra.mxu0 0.0
        %554 = vmatprep.subr.mxu0 0.0
        %555 = vmatpush1.msra.mxu0 0.0
        %556 = vmatprep.mubr.f32.mxu0 0.0
        %v557 = vand.u32 %v304, 4294901760
        %558 = vmatmul.mubr.f32.gmra.mrb[0].mxu0 %v557
        %v559 = vpop.f32.mrb[0].mxu0
        %v560 = vadd.f32 %v409, %v559
        %v561 = vpop.f32.mrb[0].mxu0
        %562 = vdwg.mxu0
        %563 = vmatprep.subr.mxu0 0.0
        %v564 = vand.u32 %v305, 4294901760
        %v565 = vsub.f32 %v305, %v564
        %566 = vmatpush1.msra.mxu0 %v565
        %567 = vmatprep.subr.mxu0 0.0
        %v568 = vand.u32 %v306, 4294901760
        %v569 = vsub.f32 %v306, %v568
        %570 = vmatpush1.msra.mxu0 %v569
        %571 = vmatprep.subr.mxu0 0.0
        %v572 = vand.u32 %v307, 4294901760
        %v573 = vsub.f32 %v307, %v572
        %574 = vmatpush1.msra.mxu0 %v573
        %575 = vmatprep.subr.mxu0 0.0
        %v576 = vand.u32 %v308, 4294901760
        %v577 = vsub.f32 %v308, %v576
        %578 = vmatpush1.msra.mxu0 %v577
        %579 = vmatprep.subr.mxu0 0.0
        %v580 = vand.u32 %v309, 4294901760
        %v581 = vsub.f32 %v309, %v580
        %582 = vmatpush1.msra.mxu0 %v581
        %583 = vmatprep.subr.mxu0 0.0
        %v584 = vand.u32 %v310, 4294901760
        %v585 = vsub.f32 %v310, %v584
        %586 = vmatpush1.msra.mxu0 %v585
        %587 = vmatprep.subr.mxu0 0.0
        %v588 = vand.u32 %v311, 4294901760
        %v589 = vsub.f32 %v311, %v588
        %590 = vmatpush1.msra.mxu0 %v589
        %591 = vmatprep.subr.mxu0 0.0
        %v592 = vand.u32 %v312, 4294901760
        %v593 = vsub.f32 %v312, %v592
        %594 = vmatpush1.msra.mxu0 %v593
        %595 = vmatprep.subr.mxu0 0.0
        %v596 = vand.u32 %v313, 4294901760
        %v597 = vsub.f32 %v313, %v596
        %598 = vmatpush1.msra.mxu0 %v597
        %599 = vmatprep.subr.mxu0 0.0
        %v600 = vand.u32 %v314, 4294901760
        %v601 = vsub.f32 %v314, %v600
        %602 = vmatpush1.msra.mxu0 %v601
        %603 = vmatprep.subr.mxu0 0.0
        %v604 = vand.u32 %v315, 4294901760
        %v605 = vsub.f32 %v315, %v604
        %606 = vmatpush1.msra.mxu0 %v605
        %607 = vmatprep.subr.mxu0 0.0
        %v608 = vand.u32 %v316, 4294901760
        %v609 = vsub.f32 %v316, %v608
        %610 = vmatpush1.msra.mxu0 %v609
        %611 = vmatprep.subr.mxu0 0.0
        %v612 = vand.u32 %v317, 4294901760
        %v613 = vsub.f32 %v317, %v612
        %614 = vmatpush1.msra.mxu0 %v613
        %615 = vmatprep.subr.mxu0 0.0
        %v616 = vand.u32 %v318, 4294901760
        %v617 = vsub.f32 %v318, %v616
        %618 = vmatpush1.msra.mxu0 %v617
        %619 = vmatprep.subr.mxu0 0.0
        %v620 = vand.u32 %v319, 4294901760
        %v621 = vsub.f32 %v319, %v620
        %622 = vmatpush1.msra.mxu0 %v621
        %623 = vmatprep.subr.mxu0 0.0
        %v624 = vand.u32 %v320, 4294901760
        %v625 = vsub.f32 %v320, %v624
        %626 = vmatpush1.msra.mxu0 %v625
        %627 = vmatprep.subr.mxu0 0.0
        %628 = vmatpush1.msra.mxu0 0.0
        %629 = vmatprep.subr.mxu0 0.0
        %630 = vmatpush1.msra.mxu0 0.0
        %631 = vmatprep.subr.mxu0 0.0
        %632 = vmatpush1.msra.mxu0 0.0
        %633 = vmatprep.subr.mxu0 0.0
        %634 = vmatpush1.msra.mxu0 0.0
        %635 = vmatprep.subr.mxu0 0.0
        %636 = vmatpush1.msra.mxu0 0.0
        %637 = vmatprep.subr.mxu0 0.0
        %638 = vmatpush1.msra.mxu0 0.0
        %639 = vmatprep.subr.mxu0 0.0
        %640 = vmatpush1.msra.mxu0 0.0
        %641 = vmatprep.subr.mxu0 0.0
        %642 = vmatpush1.msra.mxu0 0.0
        %643 = vmatprep.subr.mxu0 0.0
        %644 = vmatpush1.msra.mxu0 0.0
        %645 = vmatprep.subr.mxu0 0.0
        %646 = vmatpush1.msra.mxu0 0.0
        %647 = vmatprep.subr.mxu0 0.0
        %648 = vmatpush1.msra.mxu0 0.0
        %649 = vmatprep.subr.mxu0 0.0
        %650 = vmatpush1.msra.mxu0 0.0
        %651 = vmatprep.subr.mxu0 0.0
        %652 = vmatpush1.msra.mxu0 0.0
        %653 = vmatprep.subr.mxu0 0.0
        %654 = vmatpush1.msra.mxu0 0.0
        %655 = vmatprep.subr.mxu0 0.0
        %656 = vmatpush1.msra.mxu0 0.0
        %657 = vmatprep.subr.mxu0 0.0
        %658 = vmatpush1.msra.mxu0 0.0
        %659 = vmatprep.mubr.f32.mxu0 0.0
        %v660 = vand.u32 %v304, 4294901760
        %v661 = vsub.f32 %v304, %v660
        %662 = vmatmul.mubr.f32.gmra.mrb[0].mxu0 %v661
        %v663 = vpop.f32.mrb[0].mxu0
        %v664 = vadd.f32 %v560, %v663
        %v665 = vpop.f32.mrb[0].mxu0
        %666 = vdwg.mxu0
        %667 = vmatprep.subr.mxu0 0.0
        %v668 = vand.u32 %v305, 4294901760
        %669 = vmatpush1.msra.mxu0 %v668
        %670 = vmatprep.subr.mxu0 0.0
        %v671 = vand.u32 %v306, 4294901760
        %672 = vmatpush1.msra.mxu0 %v671
        %673 = vmatprep.subr.mxu0 0.0
        %v674 = vand.u32 %v307, 4294901760
        %675 = vmatpush1.msra.mxu0 %v674
        %676 = vmatprep.subr.mxu0 0.0
        %v677 = vand.u32 %v308, 4294901760
        %678 = vmatpush1.msra.mxu0 %v677
        %679 = vmatprep.subr.mxu0 0.0
        %v680 = vand.u32 %v309, 4294901760
        %681 = vmatpush1.msra.mxu0 %v680
        %682 = vmatprep.subr.mxu0 0.0
        %v683 = vand.u32 %v310, 4294901760
        %684 = vmatpush1.msra.mxu0 %v683
        %685 = vmatprep.subr.mxu0 0.0
        %v686 = vand.u32 %v311, 4294901760
        %687 = vmatpush1.msra.mxu0 %v686
        %688 = vmatprep.subr.mxu0 0.0
        %v689 = vand.u32 %v312, 4294901760
        %690 = vmatpush1.msra.mxu0 %v689
        %691 = vmatprep.subr.mxu0 0.0
        %v692 = vand.u32 %v313, 4294901760
        %693 = vmatpush1.msra.mxu0 %v692
        %694 = vmatprep.subr.mxu0 0.0
        %v695 = vand.u32 %v314, 4294901760
        %696 = vmatpush1.msra.mxu0 %v695
        %697 = vmatprep.subr.mxu0 0.0
        %v698 = vand.u32 %v315, 4294901760
        %699 = vmatpush1.msra.mxu0 %v698
        %700 = vmatprep.subr.mxu0 0.0
        %v701 = vand.u32 %v316, 4294901760
        %702 = vmatpush1.msra.mxu0 %v701
        %703 = vmatprep.subr.mxu0 0.0
        %v704 = vand.u32 %v317, 4294901760
        %705 = vmatpush1.msra.mxu0 %v704
        %706 = vmatprep.subr.mxu0 0.0
        %v707 = vand.u32 %v318, 4294901760
        %708 = vmatpush1.msra.mxu0 %v707
        %709 = vmatprep.subr.mxu0 0.0
        %v710 = vand.u32 %v319, 4294901760
        %711 = vmatpush1.msra.mxu0 %v710
        %712 = vmatprep.subr.mxu0 0.0
        %v713 = vand.u32 %v320, 4294901760
        %714 = vmatpush1.msra.mxu0 %v713
        %715 = vmatprep.subr.mxu0 0.0
        %716 = vmatpush1.msra.mxu0 0.0
        %717 = vmatprep.subr.mxu0 0.0
        %718 = vmatpush1.msra.mxu0 0.0
        %719 = vmatprep.subr.mxu0 0.0
        %720 = vmatpush1.msra.mxu0 0.0
        %721 = vmatprep.subr.mxu0 0.0
        %722 = vmatpush1.msra.mxu0 0.0
        %723 = vmatprep.subr.mxu0 0.0
        %724 = vmatpush1.msra.mxu0 0.0
        %725 = vmatprep.subr.mxu0 0.0
        %726 = vmatpush1.msra.mxu0 0.0
        %727 = vmatprep.subr.mxu0 0.0
        %728 = vmatpush1.msra.mxu0 0.0
        %729 = vmatprep.subr.mxu0 0.0
        %730 = vmatpush1.msra.mxu0 0.0
        %731 = vmatprep.subr.mxu0 0.0
        %732 = vmatpush1.msra.mxu0 0.0
        %733 = vmatprep.subr.mxu0 0.0
        %734 = vmatpush1.msra.mxu0 0.0
        %735 = vmatprep.subr.mxu0 0.0
        %736 = vmatpush1.msra.mxu0 0.0
        %737 = vmatprep.subr.mxu0 0.0
        %738 = vmatpush1.msra.mxu0 0.0
        %739 = vmatprep.subr.mxu0 0.0
        %740 = vmatpush1.msra.mxu0 0.0
        %741 = vmatprep.subr.mxu0 0.0
        %742 = vmatpush1.msra.mxu0 0.0
        %743 = vmatprep.subr.mxu0 0.0
        %744 = vmatpush1.msra.mxu0 0.0
        %745 = vmatprep.subr.mxu0 0.0
        %746 = vmatpush1.msra.mxu0 0.0
        %747 = vmatprep.mubr.f32.mxu0 0.0
        %v748 = vand.u32 %v304, 4294901760
        %v749 = vsub.f32 %v304, %v748
        %v750 = vand.u32 %v749, 4294901760
        %751 = vmatmul.mubr.f32.gmra.mrb[0].mxu0 %v750
        %v752 = vpop.f32.mrb[0].mxu0
        %v753 = vadd.f32 %v664, %v752
        %v754 = vpop.f32.mrb[0].mxu0
        %755 = vdwg.mxu0
        %756 = vmatprep.subr.mxu0 0.0
        %v757 = vand.u32 %v305, 4294901760
        %v758 = vsub.f32 %v305, %v757
        %v759 = vand.u32 %v758, 4294901760
        %760 = vmatpush1.msra.mxu0 %v759
        %761 = vmatprep.subr.mxu0 0.0
        %v762 = vand.u32 %v306, 4294901760
        %v763 = vsub.f32 %v306, %v762
        %v764 = vand.u32 %v763, 4294901760
        %765 = vmatpush1.msra.mxu0 %v764
        %766 = vmatprep.subr.mxu0 0.0
        %v767 = vand.u32 %v307, 4294901760
        %v768 = vsub.f32 %v307, %v767
        %v769 = vand.u32 %v768, 4294901760
        %770 = vmatpush1.msra.mxu0 %v769
        %771 = vmatprep.subr.mxu0 0.0
        %v772 = vand.u32 %v308, 4294901760
        %v773 = vsub.f32 %v308, %v772
        %v774 = vand.u32 %v773, 4294901760
        %775 = vmatpush1.msra.mxu0 %v774
        %776 = vmatprep.subr.mxu0 0.0
        %v777 = vand.u32 %v309, 4294901760
        %v778 = vsub.f32 %v309, %v777
        %v779 = vand.u32 %v778, 4294901760
        %780 = vmatpush1.msra.mxu0 %v779
        %781 = vmatprep.subr.mxu0 0.0
        %v782 = vand.u32 %v310, 4294901760
        %v783 = vsub.f32 %v310, %v782
        %v784 = vand.u32 %v783, 4294901760
        %785 = vmatpush1.msra.mxu0 %v784
        %786 = vmatprep.subr.mxu0 0.0
        %v787 = vand.u32 %v311, 4294901760
        %v788 = vsub.f32 %v311, %v787
        %v789 = vand.u32 %v788, 4294901760
        %790 = vmatpush1.msra.mxu0 %v789
        %791 = vmatprep.subr.mxu0 0.0
        %v792 = vand.u32 %v312, 4294901760
        %v793 = vsub.f32 %v312, %v792
        %v794 = vand.u32 %v793, 4294901760
        %795 = vmatpush1.msra.mxu0 %v794
        %796 = vmatprep.subr.mxu0 0.0
        %v797 = vand.u32 %v313, 4294901760
        %v798 = vsub.f32 %v313, %v797
        %v799 = vand.u32 %v798, 4294901760
        %800 = vmatpush1.msra.mxu0 %v799
        %801 = vmatprep.subr.mxu0 0.0
        %v802 = vand.u32 %v314, 4294901760
        %v803 = vsub.f32 %v314, %v802
        %v804 = vand.u32 %v803, 4294901760
        %805 = vmatpush1.msra.mxu0 %v804
        %806 = vmatprep.subr.mxu0 0.0
        %v807 = vand.u32 %v315, 4294901760
        %v808 = vsub.f32 %v315, %v807
        %v809 = vand.u32 %v808, 4294901760
        %810 = vmatpush1.msra.mxu0 %v809
        %811 = vmatprep.subr.mxu0 0.0
        %v812 = vand.u32 %v316, 4294901760
        %v813 = vsub.f32 %v316, %v812
        %v814 = vand.u32 %v813, 4294901760
        %815 = vmatpush1.msra.mxu0 %v814
        %816 = vmatprep.subr.mxu0 0.0
        %v817 = vand.u32 %v317, 4294901760
        %v818 = vsub.f32 %v317, %v817
        %v819 = vand.u32 %v818, 4294901760
        %820 = vmatpush1.msra.mxu0 %v819
        %821 = vmatprep.subr.mxu0 0.0
        %v822 = vand.u32 %v318, 4294901760
        %v823 = vsub.f32 %v318, %v822
        %v824 = vand.u32 %v823, 4294901760
        %825 = vmatpush1.msra.mxu0 %v824
        %826 = vmatprep.subr.mxu0 0.0
        %v827 = vand.u32 %v319, 4294901760
        %v828 = vsub.f32 %v319, %v827
        %v829 = vand.u32 %v828, 4294901760
        %830 = vmatpush1.msra.mxu0 %v829
        %831 = vmatprep.subr.mxu0 0.0
        %v832 = vand.u32 %v320, 4294901760
        %v833 = vsub.f32 %v320, %v832
        %v834 = vand.u32 %v833, 4294901760
        %835 = vmatpush1.msra.mxu0 %v834
        %836 = vmatprep.subr.mxu0 0.0
        %837 = vmatpush1.msra.mxu0 0.0
        %838 = vmatprep.subr.mxu0 0.0
        %839 = vmatpush1.msra.mxu0 0.0
        %840 = vmatprep.subr.mxu0 0.0
        %841 = vmatpush1.msra.mxu0 0.0
        %842 = vmatprep.subr.mxu0 0.0
        %843 = vmatpush1.msra.mxu0 0.0
        %844 = vmatprep.subr.mxu0 0.0
        %845 = vmatpush1.msra.mxu0 0.0
        %846 = vmatprep.subr.mxu0 0.0
        %847 = vmatpush1.msra.mxu0 0.0
        %848 = vmatprep.subr.mxu0 0.0
        %849 = vmatpush1.msra.mxu0 0.0
        %850 = vmatprep.subr.mxu0 0.0
        %851 = vmatpush1.msra.mxu0 0.0
        %852 = vmatprep.subr.mxu0 0.0
        %853 = vmatpush1.msra.mxu0 0.0
        %854 = vmatprep.subr.mxu0 0.0
        %855 = vmatpush1.msra.mxu0 0.0
        %856 = vmatprep.subr.mxu0 0.0
        %857 = vmatpush1.msra.mxu0 0.0
        %858 = vmatprep.subr.mxu0 0.0
        %859 = vmatpush1.msra.mxu0 0.0
        %860 = vmatprep.subr.mxu0 0.0
        %861 = vmatpush1.msra.mxu0 0.0
        %862 = vmatprep.subr.mxu0 0.0
        %863 = vmatpush1.msra.mxu0 0.0
        %864 = vmatprep.subr.mxu0 0.0
        %865 = vmatpush1.msra.mxu0 0.0
        %866 = vmatprep.subr.mxu0 0.0
        %867 = vmatpush1.msra.mxu0 0.0
        %868 = vmatprep.mubr.f32.mxu0 0.0
        %v869 = vand.u32 %v304, 4294901760
        %870 = vmatmul.mubr.f32.gmra.mrb[0].mxu0 %v869
        %v871 = vpop.f32.mrb[0].mxu0
        %v872 = vadd.f32 %v753, %v871
        %v873 = vpop.f32.mrb[0].mxu0
        %874 = vdwg.mxu0
        %875 = vmatprep.subr.mxu0 0.0
        %v876 = vand.u32 %v305, 4294901760
        %877 = vmatpush1.msra.mxu0 %v876
        %878 = vmatprep.subr.mxu0 0.0
        %v879 = vand.u32 %v306, 4294901760
        %880 = vmatpush1.msra.mxu0 %v879
        %881 = vmatprep.subr.mxu0 0.0
        %v882 = vand.u32 %v307, 4294901760
        %883 = vmatpush1.msra.mxu0 %v882
        %884 = vmatprep.subr.mxu0 0.0
        %v885 = vand.u32 %v308, 4294901760
        %886 = vmatpush1.msra.mxu0 %v885
        %887 = vmatprep.subr.mxu0 0.0
        %v888 = vand.u32 %v309, 4294901760
        %889 = vmatpush1.msra.mxu0 %v888
        %890 = vmatprep.subr.mxu0 0.0
        %v891 = vand.u32 %v310, 4294901760
        %892 = vmatpush1.msra.mxu0 %v891
        %893 = vmatprep.subr.mxu0 0.0
        %v894 = vand.u32 %v311, 4294901760
        %895 = vmatpush1.msra.mxu0 %v894
        %896 = vmatprep.subr.mxu0 0.0
        %v897 = vand.u32 %v312, 4294901760
        %898 = vmatpush1.msra.mxu0 %v897
        %899 = vmatprep.subr.mxu0 0.0
        %v900 = vand.u32 %v313, 4294901760
        %901 = vmatpush1.msra.mxu0 %v900
        %902 = vmatprep.subr.mxu0 0.0
        %v903 = vand.u32 %v314, 4294901760
        %904 = vmatpush1.msra.mxu0 %v903
        %905 = vmatprep.subr.mxu0 0.0
        %v906 = vand.u32 %v315, 4294901760
        %907 = vmatpush1.msra.mxu0 %v906
        %908 = vmatprep.subr.mxu0 0.0
        %v909 = vand.u32 %v316, 4294901760
        %910 = vmatpush1.msra.mxu0 %v909
        %911 = vmatprep.subr.mxu0 0.0
        %v912 = vand.u32 %v317, 4294901760
        %913 = vmatpush1.msra.mxu0 %v912
        %914 = vmatprep.subr.mxu0 0.0
        %v915 = vand.u32 %v318, 4294901760
        %916 = vmatpush1.msra.mxu0 %v915
        %917 = vmatprep.subr.mxu0 0.0
        %v918 = vand.u32 %v319, 4294901760
        %919 = vmatpush1.msra.mxu0 %v918
        %920 = vmatprep.subr.mxu0 0.0
        %v921 = vand.u32 %v320, 4294901760
        %922 = vmatpush1.msra.mxu0 %v921
        %923 = vmatprep.subr.mxu0 0.0
        %924 = vmatpush1.msra.mxu0 0.0
        %925 = vmatprep.subr.mxu0 0.0
        %926 = vmatpush1.msra.mxu0 0.0
        %927 = vmatprep.subr.mxu0 0.0
        %928 = vmatpush1.msra.mxu0 0.0
        %929 = vmatprep.subr.mxu0 0.0
        %930 = vmatpush1.msra.mxu0 0.0
        %931 = vmatprep.subr.mxu0 0.0
        %932 = vmatpush1.msra.mxu0 0.0
        %933 = vmatprep.subr.mxu0 0.0
        %934 = vmatpush1.msra.mxu0 0.0
        %935 = vmatprep.subr.mxu0 0.0
        %936 = vmatpush1.msra.mxu0 0.0
        %937 = vmatprep.subr.mxu0 0.0
        %938 = vmatpush1.msra.mxu0 0.0
        %939 = vmatprep.subr.mxu0 0.0
        %940 = vmatpush1.msra.mxu0 0.0
        %941 = vmatprep.subr.mxu0 0.0
        %942 = vmatpush1.msra.mxu0 0.0
        %943 = vmatprep.subr.mxu0 0.0
        %944 = vmatpush1.msra.mxu0 0.0
        %945 = vmatprep.subr.mxu0 0.0
        %946 = vmatpush1.msra.mxu0 0.0
        %947 = vmatprep.subr.mxu0 0.0
        %948 = vmatpush1.msra.mxu0 0.0
        %949 = vmatprep.subr.mxu0 0.0
        %950 = vmatpush1.msra.mxu0 0.0
        %951 = vmatprep.subr.mxu0 0.0
        %952 = vmatpush1.msra.mxu0 0.0
        %953 = vmatprep.subr.mxu0 0.0
        %954 = vmatpush1.msra.mxu0 0.0
        %955 = vmatprep.mubr.f32.mxu0 0.0
        %v956 = vand.u32 %v304, 4294901760
        %957 = vmatmul.mubr.f32.gmra.mrb[0].mxu0 %v956
        %v958 = vpop.f32.mrb[0].mxu0
        %v959 = vadd.f32 %v872, %v958
        %v960 = vpop.f32.mrb[0].mxu0
        %961 = vdwg.mxu0
        %v962 = vsub.f32 %v304, %v959
        %v963 = vmul.f32 %v962, %v962
        %964 = vmatprep.subr.mxu0 0.0
        %v965 = vand.u32 %v305, 4294901760
        %966 = vmatpush1.msra.mxu0 %v965
        %967 = vmatprep.subr.mxu0 0.0
        %v968 = vand.u32 %v306, 4294901760
        %969 = vmatpush1.msra.mxu0 %v968
        %970 = vmatprep.subr.mxu0 0.0
        %v971 = vand.u32 %v307, 4294901760
        %972 = vmatpush1.msra.mxu0 %v971
        %973 = vmatprep.subr.mxu0 0.0
        %v974 = vand.u32 %v308, 4294901760
        %975 = vmatpush1.msra.mxu0 %v974
        %976 = vmatprep.subr.mxu0 0.0
        %v977 = vand.u32 %v309, 4294901760
        %978 = vmatpush1.msra.mxu0 %v977
        %979 = vmatprep.subr.mxu0 0.0
        %v980 = vand.u32 %v310, 4294901760
        %981 = vmatpush1.msra.mxu0 %v980
        %982 = vmatprep.subr.mxu0 0.0
        %v983 = vand.u32 %v311, 4294901760
        %984 = vmatpush1.msra.mxu0 %v983
        %985 = vmatprep.subr.mxu0 0.0
        %v986 = vand.u32 %v312, 4294901760
        %987 = vmatpush1.msra.mxu0 %v986
        %988 = vmatprep.subr.mxu0 0.0
        %v989 = vand.u32 %v313, 4294901760
        %990 = vmatpush1.msra.mxu0 %v989
        %991 = vmatprep.subr.mxu0 0.0
        %v992 = vand.u32 %v314, 4294901760
        %993 = vmatpush1.msra.mxu0 %v992
        %994 = vmatprep.subr.mxu0 0.0
        %v995 = vand.u32 %v315, 4294901760
        %996 = vmatpush1.msra.mxu0 %v995
        %997 = vmatprep.subr.mxu0 0.0
        %v998 = vand.u32 %v316, 4294901760
        %999 = vmatpush1.msra.mxu0 %v998
        %1000 = vmatprep.subr.mxu0 0.0
        %v1001 = vand.u32 %v317, 4294901760
        %1002 = vmatpush1.msra.mxu0 %v1001
        %1003 = vmatprep.subr.mxu0 0.0
        %v1004 = vand.u32 %v318, 4294901760
        %1005 = vmatpush1.msra.mxu0 %v1004
        %1006 = vmatprep.subr.mxu0 0.0
        %v1007 = vand.u32 %v319, 4294901760
        %1008 = vmatpush1.msra.mxu0 %v1007
        %1009 = vmatprep.subr.mxu0 0.0
        %v1010 = vand.u32 %v320, 4294901760
        %1011 = vmatpush1.msra.mxu0 %v1010
        %1012 = vmatprep.subr.mxu0 0.0
        %1013 = vmatpush1.msra.mxu0 0.0
        %1014 = vmatprep.subr.mxu0 0.0
        %1015 = vmatpush1.msra.mxu0 0.0
        %1016 = vmatprep.subr.mxu0 0.0
        %1017 = vmatpush1.msra.mxu0 0.0
        %1018 = vmatprep.subr.mxu0 0.0
        %1019 = vmatpush1.msra.mxu0 0.0
        %1020 = vmatprep.subr.mxu0 0.0
        %1021 = vmatpush1.msra.mxu0 0.0
        %1022 = vmatprep.subr.mxu0 0.0
        %1023 = vmatpush1.msra.mxu0 0.0
        %1024 = vmatprep.subr.mxu0 0.0
        %1025 = vmatpush1.msra.mxu0 0.0
        %1026 = vmatprep.subr.mxu0 0.0
        %1027 = vmatpush1.msra.mxu0 0.0
        %1028 = vmatprep.subr.mxu0 0.0
        %1029 = vmatpush1.msra.mxu0 0.0
        %1030 = vmatprep.subr.mxu0 0.0
        %1031 = vmatpush1.msra.mxu0 0.0
        %1032 = vmatprep.subr.mxu0 0.0
        %1033 = vmatpush1.msra.mxu0 0.0
        %1034 = vmatprep.subr.mxu0 0.0
        %1035 = vmatpush1.msra.mxu0 0.0
        %1036 = vmatprep.subr.mxu0 0.0
        %1037 = vmatpush1.msra.mxu0 0.0
        %1038 = vmatprep.subr.mxu0 0.0
        %1039 = vmatpush1.msra.mxu0 0.0
        %1040 = vmatprep.subr.mxu0 0.0
        %1041 = vmatpush1.msra.mxu0 0.0
        %1042 = vmatprep.subr.mxu0 0.0
        %1043 = vmatpush1.msra.mxu0 0.0
        %1044 = vmatprep.mubr.f32.mxu0 0.0
        %v1045 = vand.u32 %v963, 4294901760
        %v1046 = vsub.f32 %v963, %v1045
        %v1047 = vand.u32 %v1046, 4294901760
        %v1048 = vsub.f32 %v1046, %v1047
        %v1049 = vand.u32 %v1048, 4294901760
        %1050 = vmatmul.mubr.f32.gmra.mrb[0].mxu0 %v1049
        %v1051 = vpop.f32.mrb[0].mxu0
        %v1052 = vadd.f32 1e-05, %v1051
        %v1053 = vpop.f32.mrb[0].mxu0
        %1054 = vdwg.mxu0
        %1055 = vmatprep.subr.mxu0 0.0
        %v1056 = vand.u32 %v305, 4294901760
        %v1057 = vsub.f32 %v305, %v1056
        %v1058 = vand.u32 %v1057, 4294901760
        %v1059 = vsub.f32 %v1057, %v1058
        %v1060 = vand.u32 %v1059, 4294901760
        %1061 = vmatpush1.msra.mxu0 %v1060
        %1062 = vmatprep.subr.mxu0 0.0
        %v1063 = vand.u32 %v306, 4294901760
        %v1064 = vsub.f32 %v306, %v1063
        %v1065 = vand.u32 %v1064, 4294901760
        %v1066 = vsub.f32 %v1064, %v1065
        %v1067 = vand.u32 %v1066, 4294901760
        %1068 = vmatpush1.msra.mxu0 %v1067
        %1069 = vmatprep.subr.mxu0 0.0
        %v1070 = vand.u32 %v307, 4294901760
        %v1071 = vsub.f32 %v307, %v1070
        %v1072 = vand.u32 %v1071, 4294901760
        %v1073 = vsub.f32 %v1071, %v1072
        %v1074 = vand.u32 %v1073, 4294901760
        %1075 = vmatpush1.msra.mxu0 %v1074
        %1076 = vmatprep.subr.mxu0 0.0
        %v1077 = vand.u32 %v308, 4294901760
        %v1078 = vsub.f32 %v308, %v1077
        %v1079 = vand.u32 %v1078, 4294901760
        %v1080 = vsub.f32 %v1078, %v1079
        %v1081 = vand.u32 %v1080, 4294901760
        %1082 = vmatpush1.msra.mxu0 %v1081
        %1083 = vmatprep.subr.mxu0 0.0
        %v1084 = vand.u32 %v309, 4294901760
        %v1085 = vsub.f32 %v309, %v1084
        %v1086 = vand.u32 %v1085, 4294901760
        %v1087 = vsub.f32 %v1085, %v1086
        %v1088 = vand.u32 %v1087, 4294901760
        %1089 = vmatpush1.msra.mxu0 %v1088
        %1090 = vmatprep.subr.mxu0 0.0
        %v1091 = vand.u32 %v310, 4294901760
        %v1092 = vsub.f32 %v310, %v1091
        %v1093 = vand.u32 %v1092, 4294901760
        %v1094 = vsub.f32 %v1092, %v1093
        %v1095 = vand.u32 %v1094, 4294901760
        %1096 = vmatpush1.msra.mxu0 %v1095
        %1097 = vmatprep.subr.mxu0 0.0
        %v1098 = vand.u32 %v311, 4294901760
        %v1099 = vsub.f32 %v311, %v1098
        %v1100 = vand.u32 %v1099, 4294901760
        %v1101 = vsub.f32 %v1099, %v1100
        %v1102 = vand.u32 %v1101, 4294901760
        %1103 = vmatpush1.msra.mxu0 %v1102
        %1104 = vmatprep.subr.mxu0 0.0
        %v1105 = vand.u32 %v312, 4294901760
        %v1106 = vsub.f32 %v312, %v1105
        %v1107 = vand.u32 %v1106, 4294901760
        %v1108 = vsub.f32 %v1106, %v1107
        %v1109 = vand.u32 %v1108, 4294901760
        %1110 = vmatpush1.msra.mxu0 %v1109
        %1111 = vmatprep.subr.mxu0 0.0
        %v1112 = vand.u32 %v313, 4294901760
        %v1113 = vsub.f32 %v313, %v1112
        %v1114 = vand.u32 %v1113, 4294901760
        %v1115 = vsub.f32 %v1113, %v1114
        %v1116 = vand.u32 %v1115, 4294901760
        %1117 = vmatpush1.msra.mxu0 %v1116
        %1118 = vmatprep.subr.mxu0 0.0
        %v1119 = vand.u32 %v314, 4294901760
        %v1120 = vsub.f32 %v314, %v1119
        %v1121 = vand.u32 %v1120, 4294901760
        %v1122 = vsub.f32 %v1120, %v1121
        %v1123 = vand.u32 %v1122, 4294901760
        %1124 = vmatpush1.msra.mxu0 %v1123
        %1125 = vmatprep.subr.mxu0 0.0
        %v1126 = vand.u32 %v315, 4294901760
        %v1127 = vsub.f32 %v315, %v1126
        %v1128 = vand.u32 %v1127, 4294901760
        %v1129 = vsub.f32 %v1127, %v1128
        %v1130 = vand.u32 %v1129, 4294901760
        %1131 = vmatpush1.msra.mxu0 %v1130
        %1132 = vmatprep.subr.mxu0 0.0
        %v1133 = vand.u32 %v316, 4294901760
        %v1134 = vsub.f32 %v316, %v1133
        %v1135 = vand.u32 %v1134, 4294901760
        %v1136 = vsub.f32 %v1134, %v1135
        %v1137 = vand.u32 %v1136, 4294901760
        %1138 = vmatpush1.msra.mxu0 %v1137
        %1139 = vmatprep.subr.mxu0 0.0
        %v1140 = vand.u32 %v317, 4294901760
        %v1141 = vsub.f32 %v317, %v1140
        %v1142 = vand.u32 %v1141, 4294901760
        %v1143 = vsub.f32 %v1141, %v1142
        %v1144 = vand.u32 %v1143, 4294901760
        %1145 = vmatpush1.msra.mxu0 %v1144
        %1146 = vmatprep.subr.mxu0 0.0
        %v1147 = vand.u32 %v318, 4294901760
        %v1148 = vsub.f32 %v318, %v1147
        %v1149 = vand.u32 %v1148, 4294901760
        %v1150 = vsub.f32 %v1148, %v1149
        %v1151 = vand.u32 %v1150, 4294901760
        %1152 = vmatpush1.msra.mxu0 %v1151
        %1153 = vmatprep.subr.mxu0 0.0
        %v1154 = vand.u32 %v319, 4294901760
        %v1155 = vsub.f32 %v319, %v1154
        %v1156 = vand.u32 %v1155, 4294901760
        %v1157 = vsub.f32 %v1155, %v1156
        %v1158 = vand.u32 %v1157, 4294901760
        %1159 = vmatpush1.msra.mxu0 %v1158
        %1160 = vmatprep.subr.mxu0 0.0
        %v1161 = vand.u32 %v320, 4294901760
        %v1162 = vsub.f32 %v320, %v1161
        %v1163 = vand.u32 %v1162, 4294901760
        %v1164 = vsub.f32 %v1162, %v1163
        %v1165 = vand.u32 %v1164, 4294901760
        %1166 = vmatpush1.msra.mxu0 %v1165
        %1167 = vmatprep.subr.mxu0 0.0
        %1168 = vmatpush1.msra.mxu0 0.0
        %1169 = vmatprep.subr.mxu0 0.0
        %1170 = vmatpush1.msra.mxu0 0.0
        %1171 = vmatprep.subr.mxu0 0.0
        %1172 = vmatpush1.msra.mxu0 0.0
        %1173 = vmatprep.subr.mxu0 0.0
        %1174 = vmatpush1.msra.mxu0 0.0
        %1175 = vmatprep.subr.mxu0 0.0
        %1176 = vmatpush1.msra.mxu0 0.0
        %1177 = vmatprep.subr.mxu0 0.0
        %1178 = vmatpush1.msra.mxu0 0.0
        %1179 = vmatprep.subr.mxu0 0.0
        %1180 = vmatpush1.msra.mxu0 0.0
        %1181 = vmatprep.subr.mxu0 0.0
        %1182 = vmatpush1.msra.mxu0 0.0
        %1183 = vmatprep.subr.mxu0 0.0
        %1184 = vmatpush1.msra.mxu0 0.0
        %1185 = vmatprep.subr.mxu0 0.0
        %1186 = vmatpush1.msra.mxu0 0.0
        %1187 = vmatprep.subr.mxu0 0.0
        %1188 = vmatpush1.msra.mxu0 0.0
        %1189 = vmatprep.subr.mxu0 0.0
        %1190 = vmatpush1.msra.mxu0 0.0
        %1191 = vmatprep.subr.mxu0 0.0
        %1192 = vmatpush1.msra.mxu0 0.0
        %1193 = vmatprep.subr.mxu0 0.0
        %1194 = vmatpush1.msra.mxu0 0.0
        %1195 = vmatprep.subr.mxu0 0.0
        %1196 = vmatpush1.msra.mxu0 0.0
        %1197 = vmatprep.subr.mxu0 0.0
        %1198 = vmatpush1.msra.mxu0 0.0
        %1199 = vmatprep.mubr.f32.mxu0 0.0
        %v1200 = vand.u32 %v963, 4294901760
        %1201 = vmatmul.mubr.f32.gmra.mrb[0].mxu0 %v1200
        %v1202 = vpop.f32.mrb[0].mxu0
        %v1203 = vadd.f32 %v1052, %v1202
        %v1204 = vpop.f32.mrb[0].mxu0
        %1205 = vdwg.mxu0
        %1206 = vmatprep.subr.mxu0 0.0
        %v1207 = vand.u32 %v305, 4294901760
        %v1208 = vsub.f32 %v305, %v1207
        %1209 = vmatpush1.msra.mxu0 %v1208
        %1210 = vmatprep.subr.mxu0 0.0
        %v1211 = vand.u32 %v306, 4294901760
        %v1212 = vsub.f32 %v306, %v1211
        %1213 = vmatpush1.msra.mxu0 %v1212
        %1214 = vmatprep.subr.mxu0 0.0
        %v1215 = vand.u32 %v307, 4294901760
        %v1216 = vsub.f32 %v307, %v1215
        %1217 = vmatpush1.msra.mxu0 %v1216
        %1218 = vmatprep.subr.mxu0 0.0
        %v1219 = vand.u32 %v308, 4294901760
        %v1220 = vsub.f32 %v308, %v1219
        %1221 = vmatpush1.msra.mxu0 %v1220
        %1222 = vmatprep.subr.mxu0 0.0
        %v1223 = vand.u32 %v309, 4294901760
        %v1224 = vsub.f32 %v309, %v1223
        %1225 = vmatpush1.msra.mxu0 %v1224
        %1226 = vmatprep.subr.mxu0 0.0
        %v1227 = vand.u32 %v310, 4294901760
        %v1228 = vsub.f32 %v310, %v1227
        %1229 = vmatpush1.msra.mxu0 %v1228
        %1230 = vmatprep.subr.mxu0 0.0
        %v1231 = vand.u32 %v311, 4294901760
        %v1232 = vsub.f32 %v311, %v1231
        %1233 = vmatpush1.msra.mxu0 %v1232
        %1234 = vmatprep.subr.mxu0 0.0
        %v1235 = vand.u32 %v312, 4294901760
        %v1236 = vsub.f32 %v312, %v1235
        %1237 = vmatpush1.msra.mxu0 %v1236
        %1238 = vmatprep.subr.mxu0 0.0
        %v1239 = vand.u32 %v313, 4294901760
        %v1240 = vsub.f32 %v313, %v1239
        %1241 = vmatpush1.msra.mxu0 %v1240
        %1242 = vmatprep.subr.mxu0 0.0
        %v1243 = vand.u32 %v314, 4294901760
        %v1244 = vsub.f32 %v314, %v1243
        %1245 = vmatpush1.msra.mxu0 %v1244
        %1246 = vmatprep.subr.mxu0 0.0
        %v1247 = vand.u32 %v315, 4294901760
        %v1248 = vsub.f32 %v315, %v1247
        %1249 = vmatpush1.msra.mxu0 %v1248
        %1250 = vmatprep.subr.mxu0 0.0
        %v1251 = vand.u32 %v316, 4294901760
        %v1252 = vsub.f32 %v316, %v1251
        %1253 = vmatpush1.msra.mxu0 %v1252
        %1254 = vmatprep.subr.mxu0 0.0
        %v1255 = vand.u32 %v317, 4294901760
        %v1256 = vsub.f32 %v317, %v1255
        %1257 = vmatpush1.msra.mxu0 %v1256
        %1258 = vmatprep.subr.mxu0 0.0
        %v1259 = vand.u32 %v318, 4294901760
        %v1260 = vsub.f32 %v318, %v1259
        %1261 = vmatpush1.msra.mxu0 %v1260
        %1262 = vmatprep.subr.mxu0 0.0
        %v1263 = vand.u32 %v319, 4294901760
        %v1264 = vsub.f32 %v319, %v1263
        %1265 = vmatpush1.msra.mxu0 %v1264
        %1266 = vmatprep.subr.mxu0 0.0
        %v1267 = vand.u32 %v320, 4294901760
        %v1268 = vsub.f32 %v320, %v1267
        %1269 = vmatpush1.msra.mxu0 %v1268
        %1270 = vmatprep.subr.mxu0 0.0
        %1271 = vmatpush1.msra.mxu0 0.0
        %1272 = vmatprep.subr.mxu0 0.0
        %1273 = vmatpush1.msra.mxu0 0.0
        %1274 = vmatprep.subr.mxu0 0.0
        %1275 = vmatpush1.msra.mxu0 0.0
        %1276 = vmatprep.subr.mxu0 0.0
        %1277 = vmatpush1.msra.mxu0 0.0
        %1278 = vmatprep.subr.mxu0 0.0
        %1279 = vmatpush1.msra.mxu0 0.0
        %1280 = vmatprep.subr.mxu0 0.0
        %1281 = vmatpush1.msra.mxu0 0.0
        %1282 = vmatprep.subr.mxu0 0.0
        %1283 = vmatpush1.msra.mxu0 0.0
        %1284 = vmatprep.subr.mxu0 0.0
        %1285 = vmatpush1.msra.mxu0 0.0
        %1286 = vmatprep.subr.mxu0 0.0
        %1287 = vmatpush1.msra.mxu0 0.0
        %1288 = vmatprep.subr.mxu0 0.0
        %1289 = vmatpush1.msra.mxu0 0.0
        %1290 = vmatprep.subr.mxu0 0.0
        %1291 = vmatpush1.msra.mxu0 0.0
        %1292 = vmatprep.subr.mxu0 0.0
        %1293 = vmatpush1.msra.mxu0 0.0
        %1294 = vmatprep.subr.mxu0 0.0
        %1295 = vmatpush1.msra.mxu0 0.0
        %1296 = vmatprep.subr.mxu0 0.0
        %1297 = vmatpush1.msra.mxu0 0.0
        %1298 = vmatprep.subr.mxu0 0.0
        %1299 = vmatpush1.msra.mxu0 0.0
        %1300 = vmatprep.subr.mxu0 0.0
        %1301 = vmatpush1.msra.mxu0 0.0
        %1302 = vmatprep.mubr.f32.mxu0 0.0
        %v1303 = vand.u32 %v963, 4294901760
        %v1304 = vsub.f32 %v963, %v1303
        %1305 = vmatmul.mubr.f32.gmra.mrb[0].mxu0 %v1304
        %v1306 = vpop.f32.mrb[0].mxu0
        %v1307 = vadd.f32 %v1203, %v1306
        %v1308 = vpop.f32.mrb[0].mxu0
        %1309 = vdwg.mxu0
        %1310 = vmatprep.subr.mxu0 0.0
        %v1311 = vand.u32 %v305, 4294901760
        %1312 = vmatpush1.msra.mxu0 %v1311
        %1313 = vmatprep.subr.mxu0 0.0
        %v1314 = vand.u32 %v306, 4294901760
        %1315 = vmatpush1.msra.mxu0 %v1314
        %1316 = vmatprep.subr.mxu0 0.0
        %v1317 = vand.u32 %v307, 4294901760
        %1318 = vmatpush1.msra.mxu0 %v1317
        %1319 = vmatprep.subr.mxu0 0.0
        %v1320 = vand.u32 %v308, 4294901760
        %1321 = vmatpush1.msra.mxu0 %v1320
        %1322 = vmatprep.subr.mxu0 0.0
        %v1323 = vand.u32 %v309, 4294901760
        %1324 = vmatpush1.msra.mxu0 %v1323
        %1325 = vmatprep.subr.mxu0 0.0
        %v1326 = vand.u32 %v310, 4294901760
        %1327 = vmatpush1.msra.mxu0 %v1326
        %1328 = vmatprep.subr.mxu0 0.0
        %v1329 = vand.u32 %v311, 4294901760
        %1330 = vmatpush1.msra.mxu0 %v1329
        %1331 = vmatprep.subr.mxu0 0.0
        %v1332 = vand.u32 %v312, 4294901760
        %1333 = vmatpush1.msra.mxu0 %v1332
        %1334 = vmatprep.subr.mxu0 0.0
        %v1335 = vand.u32 %v313, 4294901760
        %1336 = vmatpush1.msra.mxu0 %v1335
        %1337 = vmatprep.subr.mxu0 0.0
        %v1338 = vand.u32 %v314, 4294901760
        %1339 = vmatpush1.msra.mxu0 %v1338
        %1340 = vmatprep.subr.mxu0 0.0
        %v1341 = vand.u32 %v315, 4294901760
        %1342 = vmatpush1.msra.mxu0 %v1341
        %1343 = vmatprep.subr.mxu0 0.0
        %v1344 = vand.u32 %v316, 4294901760
        %1345 = vmatpush1.msra.mxu0 %v1344
        %1346 = vmatprep.subr.mxu0 0.0
        %v1347 = vand.u32 %v317, 4294901760
        %1348 = vmatpush1.msra.mxu0 %v1347
        %1349 = vmatprep.subr.mxu0 0.0
        %v1350 = vand.u32 %v318, 4294901760
        %1351 = vmatpush1.msra.mxu0 %v1350
        %1352 = vmatprep.subr.mxu0 0.0
        %v1353 = vand.u32 %v319, 4294901760
        %1354 = vmatpush1.msra.mxu0 %v1353
        %1355 = vmatprep.subr.mxu0 0.0
        %v1356 = vand.u32 %v320, 4294901760
        %1357 = vmatpush1.msra.mxu0 %v1356
        %1358 = vmatprep.subr.mxu0 0.0
        %1359 = vmatpush1.msra.mxu0 0.0
        %1360 = vmatprep.subr.mxu0 0.0
        %1361 = vmatpush1.msra.mxu0 0.0
        %1362 = vmatprep.subr.mxu0 0.0
        %1363 = vmatpush1.msra.mxu0 0.0
        %1364 = vmatprep.subr.mxu0 0.0
        %1365 = vmatpush1.msra.mxu0 0.0
        %1366 = vmatprep.subr.mxu0 0.0
        %1367 = vmatpush1.msra.mxu0 0.0
        %1368 = vmatprep.subr.mxu0 0.0
        %1369 = vmatpush1.msra.mxu0 0.0
        %1370 = vmatprep.subr.mxu0 0.0
        %1371 = vmatpush1.msra.mxu0 0.0
        %1372 = vmatprep.subr.mxu0 0.0
        %1373 = vmatpush1.msra.mxu0 0.0
        %1374 = vmatprep.subr.mxu0 0.0
        %1375 = vmatpush1.msra.mxu0 0.0
        %1376 = vmatprep.subr.mxu0 0.0
        %1377 = vmatpush1.msra.mxu0 0.0
        %1378 = vmatprep.subr.mxu0 0.0
        %1379 = vmatpush1.msra.mxu0 0.0
        %1380 = vmatprep.subr.mxu0 0.0
        %1381 = vmatpush1.msra.mxu0 0.0
        %1382 = vmatprep.subr.mxu0 0.0
        %1383 = vmatpush1.msra.mxu0 0.0
        %1384 = vmatprep.subr.mxu0 0.0
        %1385 = vmatpush1.msra.mxu0 0.0
        %1386 = vmatprep.subr.mxu0 0.0
        %1387 = vmatpush1.msra.mxu0 0.0
        %1388 = vmatprep.subr.mxu0 0.0
        %1389 = vmatpush1.msra.mxu0 0.0
        %1390 = vmatprep.mubr.f32.mxu0 0.0
        %v1391 = vand.u32 %v963, 4294901760
        %v1392 = vsub.f32 %v963, %v1391
        %v1393 = vand.u32 %v1392, 4294901760
        %1394 = vmatmul.mubr.f32.gmra.mrb[0].mxu0 %v1393
        %v1395 = vpop.f32.mrb[0].mxu0
        %v1396 = vadd.f32 %v1307, %v1395
        %v1397 = vpop.f32.mrb[0].mxu0
        %1398 = vdwg.mxu0
        %1399 = vmatprep.subr.mxu0 0.0
        %v1400 = vand.u32 %v305, 4294901760
        %v1401 = vsub.f32 %v305, %v1400
        %v1402 = vand.u32 %v1401, 4294901760
        %1403 = vmatpush1.msra.mxu0 %v1402
        %1404 = vmatprep.subr.mxu0 0.0
        %v1405 = vand.u32 %v306, 4294901760
        %v1406 = vsub.f32 %v306, %v1405
        %v1407 = vand.u32 %v1406, 4294901760
        %1408 = vmatpush1.msra.mxu0 %v1407
        %1409 = vmatprep.subr.mxu0 0.0
        %v1410 = vand.u32 %v307, 4294901760
        %v1411 = vsub.f32 %v307, %v1410
        %v1412 = vand.u32 %v1411, 4294901760
        %1413 = vmatpush1.msra.mxu0 %v1412
        %1414 = vmatprep.subr.mxu0 0.0
        %v1415 = vand.u32 %v308, 4294901760
        %v1416 = vsub.f32 %v308, %v1415
        %v1417 = vand.u32 %v1416, 4294901760
        %1418 = vmatpush1.msra.mxu0 %v1417
        %1419 = vmatprep.subr.mxu0 0.0
        %v1420 = vand.u32 %v309, 4294901760
        %v1421 = vsub.f32 %v309, %v1420
        %v1422 = vand.u32 %v1421, 4294901760
        %1423 = vmatpush1.msra.mxu0 %v1422
        %1424 = vmatprep.subr.mxu0 0.0
        %v1425 = vand.u32 %v310, 4294901760
        %v1426 = vsub.f32 %v310, %v1425
        %v1427 = vand.u32 %v1426, 4294901760
        %1428 = vmatpush1.msra.mxu0 %v1427
        %1429 = vmatprep.subr.mxu0 0.0
        %v1430 = vand.u32 %v311, 4294901760
        %v1431 = vsub.f32 %v311, %v1430
        %v1432 = vand.u32 %v1431, 4294901760
        %1433 = vmatpush1.msra.mxu0 %v1432
        %1434 = vmatprep.subr.mxu0 0.0
        %v1435 = vand.u32 %v312, 4294901760
        %v1436 = vsub.f32 %v312, %v1435
        %v1437 = vand.u32 %v1436, 4294901760
        %1438 = vmatpush1.msra.mxu0 %v1437
        %1439 = vmatprep.subr.mxu0 0.0
        %v1440 = vand.u32 %v313, 4294901760
        %v1441 = vsub.f32 %v313, %v1440
        %v1442 = vand.u32 %v1441, 4294901760
        %1443 = vmatpush1.msra.mxu0 %v1442
        %1444 = vmatprep.subr.mxu0 0.0
        %v1445 = vand.u32 %v314, 4294901760
        %v1446 = vsub.f32 %v314, %v1445
        %v1447 = vand.u32 %v1446, 4294901760
        %1448 = vmatpush1.msra.mxu0 %v1447
        %1449 = vmatprep.subr.mxu0 0.0
        %v1450 = vand.u32 %v315, 4294901760
        %v1451 = vsub.f32 %v315, %v1450
        %v1452 = vand.u32 %v1451, 4294901760
        %1453 = vmatpush1.msra.mxu0 %v1452
        %1454 = vmatprep.subr.mxu0 0.0
        %v1455 = vand.u32 %v316, 4294901760
        %v1456 = vsub.f32 %v316, %v1455
        %v1457 = vand.u32 %v1456, 4294901760
        %1458 = vmatpush1.msra.mxu0 %v1457
        %1459 = vmatprep.subr.mxu0 0.0
        %v1460 = vand.u32 %v317, 4294901760
        %v1461 = vsub.f32 %v317, %v1460
        %v1462 = vand.u32 %v1461, 4294901760
        %1463 = vmatpush1.msra.mxu0 %v1462
        %1464 = vmatprep.subr.mxu0 0.0
        %v1465 = vand.u32 %v318, 4294901760
        %v1466 = vsub.f32 %v318, %v1465
        %v1467 = vand.u32 %v1466, 4294901760
        %1468 = vmatpush1.msra.mxu0 %v1467
        %1469 = vmatprep.subr.mxu0 0.0
        %v1470 = vand.u32 %v319, 4294901760
        %v1471 = vsub.f32 %v319, %v1470
        %v1472 = vand.u32 %v1471, 4294901760
        %1473 = vmatpush1.msra.mxu0 %v1472
        %1474 = vmatprep.subr.mxu0 0.0
        %v1475 = vand.u32 %v320, 4294901760
        %v1476 = vsub.f32 %v320, %v1475
        %v1477 = vand.u32 %v1476, 4294901760
        %1478 = vmatpush1.msra.mxu0 %v1477
        %1479 = vmatprep.subr.mxu0 0.0
        %1480 = vmatpush1.msra.mxu0 0.0
        %1481 = vmatprep.subr.mxu0 0.0
        %1482 = vmatpush1.msra.mxu0 0.0
        %1483 = vmatprep.subr.mxu0 0.0
        %1484 = vmatpush1.msra.mxu0 0.0
        %1485 = vmatprep.subr.mxu0 0.0
        %1486 = vmatpush1.msra.mxu0 0.0
        %1487 = vmatprep.subr.mxu0 0.0
        %1488 = vmatpush1.msra.mxu0 0.0
        %1489 = vmatprep.subr.mxu0 0.0
        %1490 = vmatpush1.msra.mxu0 0.0
        %1491 = vmatprep.subr.mxu0 0.0
        %1492 = vmatpush1.msra.mxu0 0.0
        %1493 = vmatprep.subr.mxu0 0.0
        %1494 = vmatpush1.msra.mxu0 0.0
        %1495 = vmatprep.subr.mxu0 0.0
        %1496 = vmatpush1.msra.mxu0 0.0
        %1497 = vmatprep.subr.mxu0 0.0
        %1498 = vmatpush1.msra.mxu0 0.0
        %1499 = vmatprep.subr.mxu0 0.0
        %1500 = vmatpush1.msra.mxu0 0.0
        %1501 = vmatprep.subr.mxu0 0.0
        %1502 = vmatpush1.msra.mxu0 0.0
        %1503 = vmatprep.subr.mxu0 0.0
        %1504 = vmatpush1.msra.mxu0 0.0
        %1505 = vmatprep.subr.mxu0 0.0
        %1506 = vmatpush1.msra.mxu0 0.0
        %1507 = vmatprep.subr.mxu0 0.0
        %1508 = vmatpush1.msra.mxu0 0.0
        %1509 = vmatprep.subr.mxu0 0.0
        %1510 = vmatpush1.msra.mxu0 0.0
        %1511 = vmatprep.mubr.f32.mxu0 0.0
        %v1512 = vand.u32 %v963, 4294901760
        %1513 = vmatmul.mubr.f32.gmra.mrb[0].mxu0 %v1512
        %v1514 = vpop.f32.mrb[0].mxu0
        %v1515 = vadd.f32 %v1396, %v1514
        %v1516 = vpop.f32.mrb[0].mxu0
        %1517 = vdwg.mxu0
        %1518 = vmatprep.subr.mxu0 0.0
        %v1519 = vand.u32 %v305, 4294901760
        %1520 = vmatpush1.msra.mxu0 %v1519
        %1521 = vmatprep.subr.mxu0 0.0
        %v1522 = vand.u32 %v306, 4294901760
        %1523 = vmatpush1.msra.mxu0 %v1522
        %1524 = vmatprep.subr.mxu0 0.0
        %v1525 = vand.u32 %v307, 4294901760
        %1526 = vmatpush1.msra.mxu0 %v1525
        %1527 = vmatprep.subr.mxu0 0.0
        %v1528 = vand.u32 %v308, 4294901760
        %1529 = vmatpush1.msra.mxu0 %v1528
        %1530 = vmatprep.subr.mxu0 0.0
        %v1531 = vand.u32 %v309, 4294901760
        %1532 = vmatpush1.msra.mxu0 %v1531
        %1533 = vmatprep.subr.mxu0 0.0
        %v1534 = vand.u32 %v310, 4294901760
        %1535 = vmatpush1.msra.mxu0 %v1534
        %1536 = vmatprep.subr.mxu0 0.0
        %v1537 = vand.u32 %v311, 4294901760
        %1538 = vmatpush1.msra.mxu0 %v1537
        %1539 = vmatprep.subr.mxu0 0.0
        %v1540 = vand.u32 %v312, 4294901760
        %1541 = vmatpush1.msra.mxu0 %v1540
        %1542 = vmatprep.subr.mxu0 0.0
        %v1543 = vand.u32 %v313, 4294901760
        %1544 = vmatpush1.msra.mxu0 %v1543
        %1545 = vmatprep.subr.mxu0 0.0
        %v1546 = vand.u32 %v314, 4294901760
        %1547 = vmatpush1.msra.mxu0 %v1546
        %1548 = vmatprep.subr.mxu0 0.0
        %v1549 = vand.u32 %v315, 4294901760
        %1550 = vmatpush1.msra.mxu0 %v1549
        %1551 = vmatprep.subr.mxu0 0.0
        %v1552 = vand.u32 %v316, 4294901760
        %1553 = vmatpush1.msra.mxu0 %v1552
        %1554 = vmatprep.subr.mxu0 0.0
        %v1555 = vand.u32 %v317, 4294901760
        %1556 = vmatpush1.msra.mxu0 %v1555
        %1557 = vmatprep.subr.mxu0 0.0
        %v1558 = vand.u32 %v318, 4294901760
        %1559 = vmatpush1.msra.mxu0 %v1558
        %1560 = vmatprep.subr.mxu0 0.0
        %v1561 = vand.u32 %v319, 4294901760
        %1562 = vmatpush1.msra.mxu0 %v1561
        %1563 = vmatprep.subr.mxu0 0.0
        %v1564 = vand.u32 %v320, 4294901760
        %1565 = vmatpush1.msra.mxu0 %v1564
        %1566 = vmatprep.subr.mxu0 0.0
        %1567 = vmatpush1.msra.mxu0 0.0
        %1568 = vmatprep.subr.mxu0 0.0
        %1569 = vmatpush1.msra.mxu0 0.0
        %1570 = vmatprep.subr.mxu0 0.0
        %1571 = vmatpush1.msra.mxu0 0.0
        %1572 = vmatprep.subr.mxu0 0.0
        %1573 = vmatpush1.msra.mxu0 0.0
        %1574 = vmatprep.subr.mxu0 0.0
        %1575 = vmatpush1.msra.mxu0 0.0
        %1576 = vmatprep.subr.mxu0 0.0
        %1577 = vmatpush1.msra.mxu0 0.0
        %1578 = vmatprep.subr.mxu0 0.0
        %1579 = vmatpush1.msra.mxu0 0.0
        %1580 = vmatprep.subr.mxu0 0.0
        %1581 = vmatpush1.msra.mxu0 0.0
        %1582 = vmatprep.subr.mxu0 0.0
        %1583 = vmatpush1.msra.mxu0 0.0
        %1584 = vmatprep.subr.mxu0 0.0
        %1585 = vmatpush1.msra.mxu0 0.0
        %1586 = vmatprep.subr.mxu0 0.0
        %1587 = vmatpush1.msra.mxu0 0.0
        %1588 = vmatprep.subr.mxu0 0.0
        %1589 = vmatpush1.msra.mxu0 0.0
        %1590 = vmatprep.subr.mxu0 0.0
        %1591 = vmatpush1.msra.mxu0 0.0
        %1592 = vmatprep.subr.mxu0 0.0
        %1593 = vmatpush1.msra.mxu0 0.0
        %1594 = vmatprep.subr.mxu0 0.0
        %1595 = vmatpush1.msra.mxu0 0.0
        %1596 = vmatprep.subr.mxu0 0.0
        %1597 = vmatpush1.msra.mxu0 0.0
        %1598 = vmatprep.mubr.f32.mxu0 0.0
        %v1599 = vand.u32 %v963, 4294901760
        %1600 = vmatmul.mubr.f32.gmra.mrb[0].mxu0 %v1599
        %v1601 = vpop.f32.mrb[0].mxu0
        %v1602 = vadd.f32 %v1515, %v1601
        %v1603 = vpop.f32.mrb[0].mxu0
        %1604 = vdwg.mxu0
        %v1605 = vrsqrt.pop %v1602
        %v1606 = vmul.f32 %v962, %v1605
        %v1607 = vld [vmem:[%s3] sm:$0x1]
        %v1608 = vlaneseq
        %v1609 = vshrl.u32 %v1608, 7
        %v1610 = vsub.s32 0, %v1609
        %v1611 = vrot.slane %v1607, %v1610
        %v1612 = vmul.f32 %v1606, %v1611
        %v1613 = vld [vmem:[%s3 + $0x1] sm:$0x1]
        %v1614 = vlaneseq
        %v1615 = vshrl.u32 %v1614, 7
        %v1616 = vsub.s32 0, %v1615
        %v1617 = vrot.slane %v1613, %v1616
        %v1618 = vadd.f32 %v1612, %v1617
        %1619 = vst [vmem:[%s230] sm:$0xff] %v1618
        %s1620 = sand.u32 %s138, 1
        %s1621 = scalar_lea.sflag [#allocation4], %s1620
        %s1622 = sand.u32 %s138, 1
        %s1623 = smul.addr %s1622, 8
        %s1624 = scalar_lea.vmem [#allocation5], %s1623
        // Predicated region
        $region45: #{tpu_custom_call.1} parent=39 // pred_check
          %p1625 = pneg %p148
        $region46: #{tpu_custom_call.1} parent=39 // pred_check_branch
          %1627 = sbr.rel (%p1625) target = $region48
        $region47: #{tpu_custom_call.1} parent=39 // pred_region
          %s1629 = ssub.s32 128, 128
          %1630 = vsyncadd %s1621, %s1629
          %s1631 = smul.addr %s20, 128
          %s1632 = scalar_lea.hbm %s5, %s1631
          %s1634 = sshll.u32 %s1624, 4
          %s1635 = int_to_ptr.vmem [resolvable:$true] %s1634
          %1637 = dma.vmem_to_hbm [thread:$0]  %s1635, 128, %s1632, %s1621
        $region48: #{tpu_custom_call.1} parent=39 // pred_fallthru
          _
      $region40: #{tpu_custom_call.1} parent=5 // pred_fallthru
        _
      %p1638 = scmp.le.s32.totalorder 2, %s15
      // Predicated region
      $region49: #{tpu_custom_call.1} parent=5 // pred_check
        %p1639 = pneg %p1638
      $region50: #{tpu_custom_call.1} parent=5 // pred_check_branch
        %1641 = sbr.rel (%p1639) target = $region52
      $region51: #{tpu_custom_call.1} parent=5 // pred_region
        %s1642 = ssub.s32 %s15, 2
        // Predicated region
        $region53: #{tpu_custom_call.1} parent=51 // pred_check
          %p1643 = pneg %p154
        $region54: #{tpu_custom_call.1} parent=51 // pred_check_branch
          %1645 = sbr.rel (%p1643) target = $region56
        $region55: #{tpu_custom_call.1} parent=51 // pred_region
          %s1646 = sand.u32 %s139, 1
          %s1647 = scalar_lea.sflag [#allocation4], %s1646
          %s1648 = sand.u32 %s139, 1
          %s1649 = smul.addr %s1648, 8
          %s1650 = scalar_lea.vmem [#allocation5], %s1649
          %1651 = dma.done %s1647, 128
        $region56: #{tpu_custom_call.1} parent=51 // pred_fallthru
          _
      $region52: #{tpu_custom_call.1} parent=5 // pred_fallthru
        _
    $region6: #{tpu_custom_call.1} parent=1 // loop_footer
      %s19 = sadd.s32 1, %s15
    $region7: #{tpu_custom_call.1} parent=1 // loop_footer_branch
      %14 = sbr.rel target = $region3
    $region8: #{tpu_custom_call.1} parent=1 // loop_exit
      _
    %1652 = vsyncpa [#allocation3], 1
    %s1653 = scalar_lea.sflag [#allocation3], 1
    %1654 = vsyncpa %s1653, 1
    %1655 = vsyncpa [#allocation4], 1
    %s1656 = scalar_lea.sflag [#allocation4], 1
    %1657 = vsyncpa %s1656, 1

</llo_original>
